<compile_context>
chip_gen: v6e
topology: v6e:2x2x1
jax: 0.10.0
libtpu: 0.0.40
codegen_flags: <defaults>
</compile_context>

<pallas_src>
import jax
import jax.numpy as jnp
from jax import lax
from jax.experimental import pallas as pl
from jax.experimental.pallas import tpu as pltpu


# ------------------------------ tiled linear ---------------------------------
def _matmul_kernel(x_ref, w_ref, o_ref, acc_ref):
    @pl.when(pl.program_id(2) == 0)
    def _():
        acc_ref[...] = jnp.zeros_like(acc_ref)

    acc_ref[...] += jnp.dot(x_ref[...], w_ref[...],
                            preferred_element_type=jnp.float32)

    @pl.when(pl.program_id(2) == pl.num_programs(2) - 1)
    def _():
        o_ref[...] = acc_ref[...].astype(o_ref.dtype)


def _matmul_bias_kernel(x_ref, w_ref, b_ref, o_ref, acc_ref):
    @pl.when(pl.program_id(2) == 0)
    def _():
        acc_ref[...] = jnp.zeros_like(acc_ref)

    acc_ref[...] += jnp.dot(x_ref[...], w_ref[...],
                            preferred_element_type=jnp.float32)

    @pl.when(pl.program_id(2) == pl.num_programs(2) - 1)
    def _():
        o_ref[...] = (acc_ref[...] + b_ref[...]).astype(o_ref.dtype)


def _pick_tile(dim, max_tile, align):
    """Largest tile <= max_tile that divides `dim` and respects TPU tiling."""
    if dim <= max_tile:
        return dim                       # full dim is always a legal block
    t = (max_tile // align) * align
    while t >= align:
        if dim % t == 0:
            return t
        t -= align
    return dim                           # no aligned divisor -> full dim


def pallas_linear(x2d, w, b=None, out_dtype=jnp.float32):
    """y = x2d @ w (+ b)   (x2d: [M,K] bf16, w: [K,N] bf16, b: [N] f32 or None)."""
    M, K = x2d.shape
    Kw, N = w.shape
    assert K == Kw
    tm = _pick_tile(M, 256, 8)
    tn = _pick_tile(N, 256, 128)
    tk = _pick_tile(K, 512, 128)
    grid = (M // tm, N // tn, K // tk)

    x_spec = pl.BlockSpec((tm, tk), lambda i, j, k: (i, k))
    w_spec = pl.BlockSpec((tk, tn), lambda i, j, k: (k, j))
    o_spec = pl.BlockSpec((tm, tn), lambda i, j, k: (i, j))
    cost = pl.CostEstimate(
        flops=2 * M * K * N,
        transcendentals=0,
        bytes_accessed=(M * K * x2d.dtype.itemsize
                        + K * N * w.dtype.itemsize
                        + M * N * jnp.dtype(out_dtype).itemsize))
    cparams = pltpu.CompilerParams(
        dimension_semantics=("parallel", "parallel", "arbitrary"))

    if b is None:
        return pl.pallas_call(
            _matmul_kernel,
            out_shape=jax.ShapeDtypeStruct((M, N), out_dtype),
            grid=grid,
            in_specs=[x_spec, w_spec],
            out_specs=o_spec,
            scratch_shapes=[pltpu.VMEM((tm, tn), jnp.float32)],
            compiler_params=cparams,
            cost_estimate=cost,
        )(x2d, w)

    return pl.pallas_call(
        _matmul_bias_kernel,
        out_shape=jax.ShapeDtypeStruct((M, N), out_dtype),
        grid=grid,
        in_specs=[x_spec, w_spec,
                  pl.BlockSpec((1, tn), lambda i, j, k: (0, j))],
        out_specs=o_spec,
        scratch_shapes=[pltpu.VMEM((tm, tn), jnp.float32)],
        compiler_params=cparams,
        cost_estimate=cost,
    )(x2d, w, b.reshape(1, N).astype(jnp.float32))


# --------------------------- attention core kernel ----------------------------
def _make_attn_kernel(G, D, scale):
    def kernel(q_ref, k_ref, v_ref, attn_ref, ctx_ref):
        q = q_ref[0]                       # (N, G*D)  bf16
        k = k_ref[0]
        v = v_ref[0]
        outs = []
        for j in range(G):                 # static unroll over heads in block
            sl = slice(j * D, (j + 1) * D)
            qh, kh, vh = q[:, sl], k[:, sl], v[:, sl]
            # scores: contract last dims of q and k directly (no k.T transpose)
            s = lax.dot_general(qh, kh, (((1,), (1,)), ((), ())),
                                preferred_element_type=jnp.float32) * scale
            m = jnp.max(s, axis=-1, keepdims=True)
            p = jnp.exp(s - m)
            p = p * pl.reciprocal(jnp.sum(p, axis=-1, keepdims=True),
                                  approx=True)
            attn_ref[0, j] = p
            outs.append(jnp.dot(p.astype(vh.dtype), vh,
                                preferred_element_type=jnp.float32))
        # single lane-dense (G*D multiple of 128) store, token-major layout
        ctx_ref[0] = jnp.concatenate(outs, axis=-1).astype(ctx_ref.dtype)
    return kernel


def _pick_head_group(H, D):
    """Heads per grid step; keep the column block a multiple of 128 lanes."""
    for g in range(min(H, 8), 0, -1):
        if H % g == 0 and (g * D) % 128 == 0:
            return g
    # TODO(synk): head_dim * group not lane (128) aligned; fall back to all heads.
    return H


def pallas_attention_core(qkv, B, N, C, H, D, scale):
    """qkv: (B, N, 3C) bf16 -> (ctx (B, N, C) bf16, attn (B, H, N, N) f32)."""
    G = _pick_head_group(H, D)
    kofs = C // (G * D)                    # column-block offset of K inside qkv
    attn, ctx = pl.pallas_call(
        _make_attn_kernel(G, D, scale),
        out_shape=(jax.ShapeDtypeStruct((B, H, N, N), jnp.float32),
                   jax.ShapeDtypeStruct((B, N, C), jnp.bfloat16)),
        grid=(B, H // G),
        in_specs=[   # same qkv array three times; index_maps pick q / k / v columns
            pl.BlockSpec((1, N, G * D), lambda b, g: (b, 0, g)),
            pl.BlockSpec((1, N, G * D), lambda b, g: (b, 0, kofs + g)),
            pl.BlockSpec((1, N, G * D), lambda b, g: (b, 0, 2 * kofs + g)),
        ],
        out_specs=(
            pl.BlockSpec((1, G, N, N), lambda b, g: (b, g, 0, 0)),
            pl.BlockSpec((1, N, G * D), lambda b, g: (b, 0, g)),
        ),
        compiler_params=pltpu.CompilerParams(
            dimension_semantics=("parallel", "parallel")),
        cost_estimate=pl.CostEstimate(
            flops=4 * B * H * N * N * D,
            transcendentals=B * H * N * (N + 1),
            bytes_accessed=(3 * B * N * C * 2 + B * H * N * N * 4
                            + B * N * C * 2)),
    )(qkv, qkv, qkv)
    return ctx, attn


# -------------------------------- full module ---------------------------------
def attention_forward(x, params, num_heads):
    """DeiT Attention.forward.  x: [B, N, C] -> (y [B, N, C], attn [B, H, N, N])."""
    B, N, C = x.shape
    H = num_heads
    D = C // H
    scale = D ** (-0.5)

    # qkv projection (qkv_bias=False -> no bias); bf16 on the MXU, f32 accum.
    x_bf = x.reshape(B * N, C).astype(jnp.bfloat16)
    qkv = pallas_linear(x_bf, params["w_qkv"].astype(jnp.bfloat16),
                        b=None, out_dtype=jnp.bfloat16)             # (B*N, 3C)
    qkv = qkv.reshape(B, N, 3 * C)                                  # free reshape

    # fused attention core: split/softmax/context with no wrapper transposes.
    ctx, attn = pallas_attention_core(qkv, B, N, C, H, D, scale)

    # attn_drop / proj_drop are p=0.0 (identity) -> no-ops.
    y = pallas_linear(ctx.reshape(B * N, C),
                      params["w_proj"].astype(jnp.bfloat16),
                      params["b_proj"], out_dtype=jnp.float32)       # (B*N, C)
    return y.reshape(B, N, C), attn


def init_params(key, dim):
    k1, k2, k3 = jax.random.split(key, 3)
    return {
        # stored as [in, out] so the kernel does x @ W directly
        "w_qkv": 0.02 * jax.random.normal(k1, (dim, 3 * dim), jnp.float32),
        "w_proj": 0.02 * jax.random.normal(k2, (dim, dim), jnp.float32),
        "b_proj": 0.01 * jax.random.normal(k3, (dim,), jnp.float32),
    }


if __name__ == "__main__":
    B, N, C = 2, 16, 256
    num_heads = 2                      # head_dim = 128 (lane aligned)

    key = jax.random.PRNGKey(0)
    kx, kp = jax.random.split(key)
    x = jax.random.normal(kx, (B, N, C), jnp.float32)
    params = init_params(kp, C)

    fwd = jax.jit(attention_forward, static_argnums=2)
    y, attn = fwd(x, params, num_heads)
    jax.block_until_ready((y, attn))

    # ----- plain-JAX reference with matching (bf16-matmul / f32-accum) precision
    H = num_heads
    D = C // H
    xb = x.reshape(B * N, C).astype(jnp.bfloat16)
    qkv_r = jnp.dot(xb, params["w_qkv"].astype(jnp.bfloat16),
                    preferred_element_type=jnp.float32).astype(jnp.bfloat16)
    qkv_r = qkv_r.reshape(B, N, 3, H, D).transpose(2, 0, 3, 1, 4)
    q_r, k_r, v_r = qkv_r[0], qkv_r[1], qkv_r[2]
    s_r = jnp.einsum("bhnd,bhmd->bhnm", q_r, k_r,
                     preferred_element_type=jnp.float32) * D ** (-0.5)
    a_r = jax.nn.softmax(s_r, axis=-1)
    ctx_r = jnp.einsum("bhnm,bhmd->bhnd", a_r.astype(jnp.bfloat16), v_r,
                       preferred_element_type=jnp.float32)
    ctx_r = ctx_r.transpose(0, 2, 1, 3).reshape(B * N, C).astype(jnp.bfloat16)
    y_r = (jnp.dot(ctx_r, params["w_proj"].astype(jnp.bfloat16),
                   preferred_element_type=jnp.float32)
           + params["b_proj"]).reshape(B, N, C)

    assert jnp.allclose(attn, a_r, atol=1e-2), "attn mismatch"
    assert jnp.allclose(y, y_r, atol=1e-2), "output mismatch"

    print("KERNEL_OK")
</pallas_src>

<mosaic_0001>
module attributes {stable_mosaic.version = 11 : i64} {
  func.func @_matmul_kernel(%arg0: i32, %arg1: i32, %arg2: i32, %arg3: memref<32x256xbf16, #tpu.memory_space<vmem>>, %arg4: memref<256x256xbf16, #tpu.memory_space<vmem>>, %arg5: memref<32x256xbf16, #tpu.memory_space<vmem>>, %arg6: memref<32x256xf32, #tpu.memory_space<vmem>>) attributes {dimension_semantics = [#tpu.dimension_semantics<parallel>, #tpu.dimension_semantics<parallel>, #tpu.dimension_semantics<arbitrary>], iteration_bounds = array<i64: 1, 3, 1>, scalar_prefetch = 0 : i64, scratch_operands = 1 : i64, tpu.core_type = #tpu.core_type<tc>, window_params = [{transform_indices = @transform_0, window_bounds = array<i64: 32, 256>}, {transform_indices = @transform_1, window_bounds = array<i64: 256, 256>}, {transform_indices = @transform_2, window_bounds = array<i64: 32, 256>}]} {
    %c0_i32 = arith.constant 0 : i32
    %0 = arith.cmpi eq, %arg2, %c0_i32 : i32
    %1 = arith.extui %0 : i1 to i32
    %c0_i32_0 = arith.constant 0 : i32
    %2 = arith.cmpi ne, %1, %c0_i32_0 : i32
    scf.if %2 {
      %cst_10 = arith.constant 0.000000e+00 : f32
      %12 = vector.broadcast %cst_10 : f32 to vector<32x256xf32>
      %c0_11 = arith.constant 0 : index
      %c0_12 = arith.constant 0 : index
      %13 = vector.load %arg6[%c0_11, %c0_12] : memref<32x256xf32, #tpu.memory_space<vmem>>, vector<32x256xf32>
      tpu.vector_store %arg6[%c0_11, %c0_12], %12 {strides = array<i32>} : memref<32x256xf32, #tpu.memory_space<vmem>>, vector<32x256xf32>,
    } else {
    }
    %c0 = arith.constant 0 : index
    %c0_1 = arith.constant 0 : index
    %3 = vector.load %arg6[%c0, %c0_1] : memref<32x256xf32, #tpu.memory_space<vmem>>, vector<32x256xf32>
    %c0_2 = arith.constant 0 : index
    %c0_3 = arith.constant 0 : index
    %4 = vector.load %arg3[%c0_2, %c0_3] : memref<32x256xbf16, #tpu.memory_space<vmem>>, vector<32x256xbf16>
    %c0_4 = arith.constant 0 : index
    %c0_5 = arith.constant 0 : index
    %5 = vector.load %arg4[%c0_4, %c0_5] : memref<256x256xbf16, #tpu.memory_space<vmem>>, vector<256x256xbf16>
    %cst = arith.constant dense<0.000000e+00> : vector<32x256xf32>
    %6 = tpu.matmul %4, %5, %cst {dimension_numbers = #tpu.dot_dimension_numbers<[1], [0], [0], [1], [0, 0, 1, 1], [], []>} : vector<32x256xbf16>, vector<256x256xbf16>, vector<32x256xf32> -> vector<32x256xf32>
    %7 = arith.addf %3, %6 : vector<32x256xf32>
    %c0_6 = arith.constant 0 : index
    %c0_7 = arith.constant 0 : index
    %8 = vector.load %arg6[%c0_6, %c0_7] : memref<32x256xf32, #tpu.memory_space<vmem>>, vector<32x256xf32>
    tpu.vector_store %arg6[%c0_6, %c0_7], %7 {strides = array<i32>} : memref<32x256xf32, #tpu.memory_space<vmem>>, vector<32x256xf32>,
    %c0_i32_8 = arith.constant 0 : i32
    %9 = arith.cmpi eq, %arg2, %c0_i32_8 : i32
    %10 = arith.extui %9 : i1 to i32
    %c0_i32_9 = arith.constant 0 : i32
    %11 = arith.cmpi ne, %10, %c0_i32_9 : i32
    scf.if %11 {
      %c0_10 = arith.constant 0 : index
      %c0_11 = arith.constant 0 : index
      %12 = vector.load %arg6[%c0_10, %c0_11] : memref<32x256xf32, #tpu.memory_space<vmem>>, vector<32x256xf32>
      %13 = arith.truncf %12 : vector<32x256xf32> to vector<32x256xbf16>
      %c0_12 = arith.constant 0 : index
      %c0_13 = arith.constant 0 : index
      %14 = vector.load %arg5[%c0_12, %c0_13] : memref<32x256xbf16, #tpu.memory_space<vmem>>, vector<32x256xbf16>
      tpu.vector_store %arg5[%c0_12, %c0_13], %13 {strides = array<i32>} : memref<32x256xbf16, #tpu.memory_space<vmem>>, vector<32x256xbf16>,
    } else {
    }
    return
  }
  func.func @transform_0(%arg0: i32, %arg1: i32, %arg2: i32) -> (i32, i32) {
    %c0_i32 = arith.constant 0 : i32
    return %arg0, %arg2 : i32, i32
  }
  func.func @transform_1(%arg0: i32, %arg1: i32, %arg2: i32) -> (i32, i32) {
    %c0_i32 = arith.constant 0 : i32
    return %arg2, %arg1 : i32, i32
  }
  func.func @transform_2(%arg0: i32, %arg1: i32, %arg2: i32) -> (i32, i32) {
    %c0_i32 = arith.constant 0 : i32
    return %arg0, %arg1 : i32, i32
  }
}

module attributes {stable_mosaic.version = 11 : i64} {
  func.func @kernel(%arg0: i32, %arg1: i32, %arg2: memref<1x16x256xbf16, #tpu.memory_space<vmem>>, %arg3: memref<1x16x256xbf16, #tpu.memory_space<vmem>>, %arg4: memref<1x16x256xbf16, #tpu.memory_space<vmem>>, %arg5: memref<1x2x16x16xf32, #tpu.memory_space<vmem>>, %arg6: memref<1x16x256xbf16, #tpu.memory_space<vmem>>) attributes {dimension_semantics = [#tpu.dimension_semantics<parallel>, #tpu.dimension_semantics<parallel>], iteration_bounds = array<i64: 2, 1>, scalar_prefetch = 0 : i64, scratch_operands = 0 : i64, tpu.core_type = #tpu.core_type<tc>, window_params = [{transform_indices = @transform_0, window_bounds = array<i64: 1, 16, 256>}, {transform_indices = @transform_1, window_bounds = array<i64: 1, 16, 256>}, {transform_indices = @transform_2, window_bounds = array<i64: 1, 16, 256>}, {transform_indices = @transform_3, window_bounds = array<i64: 1, 2, 16, 16>}, {transform_indices = @transform_4, window_bounds = array<i64: 1, 16, 256>}]} {
    %c0 = arith.constant 0 : index
    %c0_0 = arith.constant 0 : index
    %c0_1 = arith.constant 0 : index
    %0 = vector.load %arg2[%c0, %c0_0, %c0_1] : memref<1x16x256xbf16, #tpu.memory_space<vmem>>, vector<1x16x256xbf16>
    %1 = vector.shape_cast %0 : vector<1x16x256xbf16> to vector<16x256xbf16>
    %c0_2 = arith.constant 0 : index
    %c0_3 = arith.constant 0 : index
    %c0_4 = arith.constant 0 : index
    %2 = vector.load %arg3[%c0_2, %c0_3, %c0_4] : memref<1x16x256xbf16, #tpu.memory_space<vmem>>, vector<1x16x256xbf16>
    %3 = vector.shape_cast %2 : vector<1x16x256xbf16> to vector<16x256xbf16>
    %c0_5 = arith.constant 0 : index
    %c0_6 = arith.constant 0 : index
    %c0_7 = arith.constant 0 : index
    %4 = vector.load %arg4[%c0_5, %c0_6, %c0_7] : memref<1x16x256xbf16, #tpu.memory_space<vmem>>, vector<1x16x256xbf16>
    %5 = vector.shape_cast %4 : vector<1x16x256xbf16> to vector<16x256xbf16>
    %6 = vector.extract_strided_slice %1 {offsets = [0, 0], sizes = [16, 128], strides = [1, 1]} : vector<16x256xbf16> to vector<16x128xbf16>
    %7 = vector.extract_strided_slice %3 {offsets = [0, 0], sizes = [16, 128], strides = [1, 1]} : vector<16x256xbf16> to vector<16x128xbf16>
    %8 = vector.extract_strided_slice %5 {offsets = [0, 0], sizes = [16, 128], strides = [1, 1]} : vector<16x256xbf16> to vector<16x128xbf16>
    %cst = arith.constant dense<0.000000e+00> : vector<16x16xf32>
    %9 = tpu.matmul %6, %7, %cst {dimension_numbers = #tpu.dot_dimension_numbers<[1], [1], [0], [0], [0, 0, 1, 0], [], []>} : vector<16x128xbf16>, vector<16x128xbf16>, vector<16x16xf32> -> vector<16x16xf32>
    %cst_8 = arith.constant 0.0883883461 : f32
    %10 = vector.broadcast %cst_8 : f32 to vector<16x16xf32>
    %11 = arith.mulf %9, %10 : vector<16x16xf32>
    %cst_9 = arith.constant dense<0xFF800000> : vector<16xf32>
    %12 = vector.multi_reduction <maximumf>, %11, %cst_9 [1] : vector<16x16xf32> to vector<16xf32>
    %13 = vector.shape_cast %12 : vector<16xf32> to vector<16x1xf32>
    %14 = vector.broadcast %13 : vector<16x1xf32> to vector<16x16xf32>
    %15 = arith.subf %11, %14 : vector<16x16xf32>
    %16 = math.exp %15 : vector<16x16xf32>
    %cst_10 = arith.constant dense<0.000000e+00> : vector<16xf32>
    %17 = vector.multi_reduction <add>, %16, %cst_10 [1] : vector<16x16xf32> to vector<16xf32>
    %18 = vector.shape_cast %17 : vector<16xf32> to vector<16x1xf32>
    %19 = tpu.reciprocal %18 {approx = true} : vector<16x1xf32> -> vector<16x1xf32>
    %20 = vector.broadcast %19 : vector<16x1xf32> to vector<16x16xf32>
    %21 = arith.mulf %16, %20 : vector<16x16xf32>
    %c0_11 = arith.constant 0 : index
    %c0_12 = arith.constant 0 : index
    %c0_13 = arith.constant 0 : index
    %c0_14 = arith.constant 0 : index
    %22 = vector.load %arg5[%c0_11, %c0_12, %c0_13, %c0_14] : memref<1x2x16x16xf32, #tpu.memory_space<vmem>>, vector<1x1x16x16xf32>
    %23 = vector.shape_cast %22 : vector<1x1x16x16xf32> to vector<16x16xf32>
    %24 = vector.shape_cast %21 : vector<16x16xf32> to vector<1x1x16x16xf32>
    tpu.vector_store %arg5[%c0_11, %c0_12, %c0_13, %c0_14], %24 {strides = array<i32>} : memref<1x2x16x16xf32, #tpu.memory_space<vmem>>, vector<1x1x16x16xf32>,
    %25 = arith.truncf %21 : vector<16x16xf32> to vector<16x16xbf16>
    %cst_15 = arith.constant dense<0.000000e+00> : vector<16x128xf32>
    %26 = tpu.matmul %25, %8, %cst_15 {dimension_numbers = #tpu.dot_dimension_numbers<[1], [0], [0], [1], [0, 0, 1, 1], [], []>} : vector<16x16xbf16>, vector<16x128xbf16>, vector<16x128xf32> -> vector<16x128xf32>
    %27 = vector.extract_strided_slice %1 {offsets = [0, 128], sizes = [16, 128], strides = [1, 1]} : vector<16x256xbf16> to vector<16x128xbf16>
    %28 = vector.extract_strided_slice %3 {offsets = [0, 128], sizes = [16, 128], strides = [1, 1]} : vector<16x256xbf16> to vector<16x128xbf16>
    %29 = vector.extract_strided_slice %5 {offsets = [0, 128], sizes = [16, 128], strides = [1, 1]} : vector<16x256xbf16> to vector<16x128xbf16>
    %cst_16 = arith.constant dense<0.000000e+00> : vector<16x16xf32>
    %30 = tpu.matmul %27, %28, %cst_16 {dimension_numbers = #tpu.dot_dimension_numbers<[1], [1], [0], [0], [0, 0, 1, 0], [], []>} : vector<16x128xbf16>, vector<16x128xbf16>, vector<16x16xf32> -> vector<16x16xf32>
    %cst_17 = arith.constant 0.0883883461 : f32
    %31 = vector.broadcast %cst_17 : f32 to vector<16x16xf32>
    %32 = arith.mulf %30, %31 : vector<16x16xf32>
    %cst_18 = arith.constant dense<0xFF800000> : vector<16xf32>
    %33 = vector.multi_reduction <maximumf>, %32, %cst_18 [1] : vector<16x16xf32> to vector<16xf32>
    %34 = vector.shape_cast %33 : vector<16xf32> to vector<16x1xf32>
    %35 = vector.broadcast %34 : vector<16x1xf32> to vector<16x16xf32>
    %36 = arith.subf %32, %35 : vector<16x16xf32>
    %37 = math.exp %36 : vector<16x16xf32>
    %cst_19 = arith.constant dense<0.000000e+00> : vector<16xf32>
    %38 = vector.multi_reduction <add>, %37, %cst_19 [1] : vector<16x16xf32> to vector<16xf32>
    %39 = vector.shape_cast %38 : vector<16xf32> to vector<16x1xf32>
    %40 = tpu.reciprocal %39 {approx = true} : vector<16x1xf32> -> vector<16x1xf32>
    %41 = vector.broadcast %40 : vector<16x1xf32> to vector<16x16xf32>
    %42 = arith.mulf %37, %41 : vector<16x16xf32>
    %c0_20 = arith.constant 0 : index
    %c1 = arith.constant 1 : index
    %c0_21 = arith.constant 0 : index
    %c0_22 = arith.constant 0 : index
    %43 = vector.load %arg5[%c0_20, %c1, %c0_21, %c0_22] : memref<1x2x16x16xf32, #tpu.memory_space<vmem>>, vector<1x1x16x16xf32>
    %44 = vector.shape_cast %43 : vector<1x1x16x16xf32> to vector<16x16xf32>
    %45 = vector.shape_cast %42 : vector<16x16xf32> to vector<1x1x16x16xf32>
    tpu.vector_store %arg5[%c0_20, %c1, %c0_21, %c0_22], %45 {strides = array<i32>} : memref<1x2x16x16xf32, #tpu.memory_space<vmem>>, vector<1x1x16x16xf32>,
    %46 = arith.truncf %42 : vector<16x16xf32> to vector<16x16xbf16>
    %cst_23 = arith.constant dense<0.000000e+00> : vector<16x128xf32>
    %47 = tpu.matmul %46, %29, %cst_23 {dimension_numbers = #tpu.dot_dimension_numbers<[1], [0], [0], [1], [0, 0, 1, 1], [], []>} : vector<16x16xbf16>, vector<16x128xbf16>, vector<16x128xf32> -> vector<16x128xf32>
    %48 = tpu.concatenate %26, %47 in 1 : vector<16x128xf32>, vector<16x128xf32> -> vector<16x256xf32>
    %49 = arith.truncf %48 : vector<16x256xf32> to vector<16x256xbf16>
    %c0_24 = arith.constant 0 : index
    %c0_25 = arith.constant 0 : index
    %c0_26 = arith.constant 0 : index
    %50 = vector.load %arg6[%c0_24, %c0_25, %c0_26] : memref<1x16x256xbf16, #tpu.memory_space<vmem>>, vector<1x16x256xbf16>
    %51 = vector.shape_cast %50 : vector<1x16x256xbf16> to vector<16x256xbf16>
    %52 = vector.shape_cast %49 : vector<16x256xbf16> to vector<1x16x256xbf16>
    tpu.vector_store %arg6[%c0_24, %c0_25, %c0_26], %52 {strides = array<i32>} : memref<1x16x256xbf16, #tpu.memory_space<vmem>>, vector<1x16x256xbf16>,
    return
  }
  func.func @transform_0(%arg0: i32, %arg1: i32) -> (i32, i32, i32) {
    %c0_i32 = arith.constant 0 : i32
    %c0_i32_0 = arith.constant 0 : i32
    return %arg0, %c0_i32, %arg1 : i32, i32, i32
  }
  func.func @transform_1(%arg0: i32, %arg1: i32) -> (i32, i32, i32) {
    %c1_i32 = arith.constant 1 : i32
    %0 = arith.addi %c1_i32, %arg1 : i32
    %c0_i32 = arith.constant 0 : i32
    %c0_i32_0 = arith.constant 0 : i32
    return %arg0, %c0_i32, %0 : i32, i32, i32
  }
  func.func @transform_2(%arg0: i32, %arg1: i32) -> (i32, i32, i32) {
    %c2_i32 = arith.constant 2 : i32
    %0 = arith.addi %c2_i32, %arg1 : i32
    %c0_i32 = arith.constant 0 : i32
    %c0_i32_0 = arith.constant 0 : i32
    return %arg0, %c0_i32, %0 : i32, i32, i32
  }
  func.func @transform_3(%arg0: i32, %arg1: i32) -> (i32, i32, i32, i32) {
    %c0_i32 = arith.constant 0 : i32
    %c0_i32_0 = arith.constant 0 : i32
    %c0_i32_1 = arith.constant 0 : i32
    return %arg0, %arg1, %c0_i32, %c0_i32_0 : i32, i32, i32, i32
  }
  func.func @transform_4(%arg0: i32, %arg1: i32) -> (i32, i32, i32) {
    %c0_i32 = arith.constant 0 : i32
    %c0_i32_0 = arith.constant 0 : i32
    return %arg0, %c0_i32, %arg1 : i32, i32, i32
  }
}

module attributes {stable_mosaic.version = 11 : i64} {
  func.func @_matmul_bias_kernel(%arg0: i32, %arg1: i32, %arg2: i32, %arg3: memref<32x256xbf16, #tpu.memory_space<vmem>>, %arg4: memref<256x256xbf16, #tpu.memory_space<vmem>>, %arg5: memref<1x256xf32, #tpu.memory_space<vmem>>, %arg6: memref<32x256xf32, #tpu.memory_space<vmem>>, %arg7: memref<32x256xf32, #tpu.memory_space<vmem>>) attributes {dimension_semantics = [#tpu.dimension_semantics<parallel>, #tpu.dimension_semantics<parallel>, #tpu.dimension_semantics<arbitrary>], iteration_bounds = array<i64: 1, 1, 1>, scalar_prefetch = 0 : i64, scratch_operands = 1 : i64, tpu.core_type = #tpu.core_type<tc>, window_params = [{transform_indices = @transform_0, window_bounds = array<i64: 32, 256>}, {transform_indices = @transform_1, window_bounds = array<i64: 256, 256>}, {transform_indices = @transform_2, window_bounds = array<i64: 1, 256>}, {transform_indices = @transform_3, window_bounds = array<i64: 32, 256>}]} {
    %c0_i32 = arith.constant 0 : i32
    %0 = arith.cmpi eq, %arg2, %c0_i32 : i32
    %1 = arith.extui %0 : i1 to i32
    %c0_i32_0 = arith.constant 0 : i32
    %2 = arith.cmpi ne, %1, %c0_i32_0 : i32
    scf.if %2 {
      %cst_10 = arith.constant 0.000000e+00 : f32
      %12 = vector.broadcast %cst_10 : f32 to vector<32x256xf32>
      %c0_11 = arith.constant 0 : index
      %c0_12 = arith.constant 0 : index
      %13 = vector.load %arg7[%c0_11, %c0_12] : memref<32x256xf32, #tpu.memory_space<vmem>>, vector<32x256xf32>
      tpu.vector_store %arg7[%c0_11, %c0_12], %12 {strides = array<i32>} : memref<32x256xf32, #tpu.memory_space<vmem>>, vector<32x256xf32>,
    } else {
    }
    %c0 = arith.constant 0 : index
    %c0_1 = arith.constant 0 : index
    %3 = vector.load %arg7[%c0, %c0_1] : memref<32x256xf32, #tpu.memory_space<vmem>>, vector<32x256xf32>
    %c0_2 = arith.constant 0 : index
    %c0_3 = arith.constant 0 : index
    %4 = vector.load %arg3[%c0_2, %c0_3] : memref<32x256xbf16, #tpu.memory_space<vmem>>, vector<32x256xbf16>
    %c0_4 = arith.constant 0 : index
    %c0_5 = arith.constant 0 : index
    %5 = vector.load %arg4[%c0_4, %c0_5] : memref<256x256xbf16, #tpu.memory_space<vmem>>, vector<256x256xbf16>
    %cst = arith.constant dense<0.000000e+00> : vector<32x256xf32>
    %6 = tpu.matmul %4, %5, %cst {dimension_numbers = #tpu.dot_dimension_numbers<[1], [0], [0], [1], [0, 0, 1, 1], [], []>} : vector<32x256xbf16>, vector<256x256xbf16>, vector<32x256xf32> -> vector<32x256xf32>
    %7 = arith.addf %3, %6 : vector<32x256xf32>
    %c0_6 = arith.constant 0 : index
    %c0_7 = arith.constant 0 : index
    %8 = vector.load %arg7[%c0_6, %c0_7] : memref<32x256xf32, #tpu.memory_space<vmem>>, vector<32x256xf32>
    tpu.vector_store %arg7[%c0_6, %c0_7], %7 {strides = array<i32>} : memref<32x256xf32, #tpu.memory_space<vmem>>, vector<32x256xf32>,
    %c0_i32_8 = arith.constant 0 : i32
    %9 = arith.cmpi eq, %arg2, %c0_i32_8 : i32
    %10 = arith.extui %9 : i1 to i32
    %c0_i32_9 = arith.constant 0 : i32
    %11 = arith.cmpi ne, %10, %c0_i32_9 : i32
    scf.if %11 {
      %c0_10 = arith.constant 0 : index
      %c0_11 = arith.constant 0 : index
      %12 = vector.load %arg7[%c0_10, %c0_11] : memref<32x256xf32, #tpu.memory_space<vmem>>, vector<32x256xf32>
      %c0_12 = arith.constant 0 : index
      %c0_13 = arith.constant 0 : index
      %13 = vector.load %arg5[%c0_12, %c0_13] : memref<1x256xf32, #tpu.memory_space<vmem>>, vector<1x256xf32>
      %14 = vector.broadcast %13 : vector<1x256xf32> to vector<32x256xf32>
      %15 = arith.addf %12, %14 : vector<32x256xf32>
      %c0_14 = arith.constant 0 : index
      %c0_15 = arith.constant 0 : index
      %16 = vector.load %arg6[%c0_14, %c0_15] : memref<32x256xf32, #tpu.memory_space<vmem>>, vector<32x256xf32>
      tpu.vector_store %arg6[%c0_14, %c0_15], %15 {strides = array<i32>} : memref<32x256xf32, #tpu.memory_space<vmem>>, vector<32x256xf32>,
    } else {
    }
    return
  }
  func.func @transform_0(%arg0: i32, %arg1: i32, %arg2: i32) -> (i32, i32) {
    %c0_i32 = arith.constant 0 : i32
    return %arg0, %arg2 : i32, i32
  }
  func.func @transform_1(%arg0: i32, %arg1: i32, %arg2: i32) -> (i32, i32) {
    %c0_i32 = arith.constant 0 : i32
    return %arg2, %arg1 : i32, i32
  }
  func.func @transform_2(%arg0: i32, %arg1: i32, %arg2: i32) -> (i32, i32) {
    %c0_i32 = arith.constant 0 : i32
    %c0_i32_0 = arith.constant 0 : i32
    return %c0_i32, %arg1 : i32, i32
  }
  func.func @transform_3(%arg0: i32, %arg1: i32, %arg2: i32) -> (i32, i32) {
    %c0_i32 = arith.constant 0 : i32
    return %arg0, %arg1 : i32, i32
  }
}

</mosaic_0001>

<llo_original>
// kernel: attention_forward.4
$region0: #{attention_forward.4}
  #allocation0 [shape = 'u32[]', space=smem, size = 0x4, offset = 0x4, fixed_abs, tag = 'smem constant byte address 0x4 - core index']
  #allocation1 [shape = 'u32[144,128]{1,0:T(1,128)}', space=vmem, size = 0x12000, scoped, tag = 'internal scratch']
  %s0 = inlined_call_operand.vmem [shape: bf16[2,16,768], index: 0, kind: input, shape index: {}, may-alias: {0,1,2}]
  %s1 = inlined_call_operand.vmem [shape: bf16[2,16,768], index: 1, kind: input, shape index: {}, may-alias: {0,1,2}]
  %s2 = inlined_call_operand.vmem [shape: bf16[2,16,768], index: 2, kind: input, shape index: {}, may-alias: {0,1,2}]
  %s3 = inlined_call_operand.hbm [shape: f32[2,2,16,16], index: 3, kind: output, shape index: {0}]
  %s4 = inlined_call_operand.vmem [shape: bf16[2,16,256], index: 4, kind: output, shape index: {1}]
  %5 = xla_tuple %s3, %s4
  %s6 = sld [smem:[#allocation0]]
  $region167: #{attention_forward.4} parent=0
    _
  %s8 = ssub.s32 1, %s6
  %s9 = scalar_select 0, %s8, %s6
  $region1: #{attention_forward.4} parent=0
    #allocation2 [shape = 'u8[16384]{0}', space=vmem, size = 0x4000, scoped, tag = 'input window, operand 0']
    #allocation3 [shape = 'u8[16384]{0}', space=vmem, size = 0x4000, scoped, tag = 'input window, operand 1']
    #allocation4 [shape = 'u8[16384]{0}', space=vmem, size = 0x4000, scoped, tag = 'input window, operand 2']
    #allocation5 [shape = 'u8[32768]{0}', space=vmem, size = 0x8000, scoped, tag = 'output window, operand 0']
    #allocation6 [shape = 's32[2]{0}', space=sflag, size = 0x8, scoped, tag = 'scoped memory for attention_forward.4']
    %10 = vsyncpa [#allocation6], 0
    %s11 = scalar_lea.sflag [#allocation6], 1
    %12 = vsyncpa %s11, 0
    loop: start=0, step=1, limit=4
    $region2: #{attention_forward.4} parent=1 // loop_pre_header
      _
    $region3: #{attention_forward.4} parent=1 // loop_header
      %s14 = sphi 0, %s18
      %p15 = scmp.ge.s32.totalorder %s14, 4
      %s21 = sphi 0, %s33
      %s22 = sphi 0, %s29
      %s23 = sphi 0, %s21
      %s24 = sphi 0, %s22
      %s25 = sphi 0, %s23
      %s26 = sphi 0, %s24
      %s38 = sphi 0, %s40
      %s41 = sphi 0, %s38
      %s42 = sphi 0, %s41
      %s58 = sphi 0, %s42
      %s68 = sphi 0, %s70
      %s71 = sphi 0, %s68
      %s72 = sphi 0, %s71
      %s88 = sphi 0, %s72
      %s98 = sphi 0, %s100
      %s101 = sphi 0, %s98
      %s102 = sphi 0, %s101
      %s118 = sphi 0, %s102
      %s126 = sphi 0, %s128
      %s129 = sphi 0, %s126
      %s130 = sphi 0, %s129
      %s146 = sphi 0, %s130
      %s154 = sphi 0, %s156
      %s157 = sphi 0, %s154
      %s158 = sphi 0, %s157
      %s174 = sphi 0, %s158
    $region4: #{attention_forward.4} parent=1 // loop_header_branch
      %17 = sbr.rel (%p15) target = $region8
    $region5: #{attention_forward.4} parent=1 // loop_body
      %s19 = ssub.s32 %s14, 1
      %s20 = ssub.s32 %s14, 2
      %s27 = sadd.s32 1, %s22
      %p28 = scmp.ge.s32.totalorder %s27, 1
      %s29 = scalar_select %p28, 0, %s27
      %s30 = sadd.s32 1, %s21
      %s31 = scalar_select %p28, %s30, %s21
      %p32 = scmp.ge.s32.totalorder %s31, 2
      %s33 = scalar_select %p32, 0, %s31
      %s34 = ssub.s32 %s21, %s33
      %s35 = ssub.s32 %s22, %s29
      %s36 = sor.u32 %s34, %s35
      %p37 = scmp.eq.s32.totalorder %s36, 0
      %s39 = sadd.s32 %s38, 1
      %s40 = scalar_select %p37, %s38, %s39
      %p43 = pneg %p37
      %p44 = scmp.eq.s32.totalorder %s14, 1
      %p45 = por %p43, %p44
      %p46 = scmp.ne.s32.totalorder %s38, %s41
      %p47 = scmp.eq.s32.totalorder %s14, 0
      %p48 = por %p46, %p47
      %p49 = scmp.ne.s32.totalorder %s38, %s41
      %p50 = scmp.eq.s32.totalorder %s19, 1
      %p51 = por %p49, %p50
      %p52 = scmp.ne.s32.totalorder %s41, %s42
      %p53 = scmp.eq.s32.totalorder %s19, 0
      %p54 = por %p52, %p53
      %p55 = scmp.ne.s32.totalorder %s41, %s42
      %p56 = scmp.eq.s32.totalorder %s20, 1
      %p57 = por %p55, %p56
      %p59 = scmp.ne.s32.totalorder %s42, %s58
      %p60 = scmp.eq.s32.totalorder %s20, 0
      %p61 = por %p59, %p60
      %s62 = sadd.s32 %s22, 1
      %s63 = sadd.s32 %s29, 1
      %s64 = ssub.s32 %s21, %s33
      %s65 = ssub.s32 %s62, %s63
      %s66 = sor.u32 %s64, %s65
      %p67 = scmp.eq.s32.totalorder %s66, 0
      %s69 = sadd.s32 %s68, 1
      %s70 = scalar_select %p67, %s68, %s69
      %p73 = pneg %p67
      %p74 = scmp.eq.s32.totalorder %s14, 1
      %p75 = por %p73, %p74
      %p76 = scmp.ne.s32.totalorder %s68, %s71
      %p77 = scmp.eq.s32.totalorder %s14, 0
      %p78 = por %p76, %p77
      %p79 = scmp.ne.s32.totalorder %s68, %s71
      %p80 = scmp.eq.s32.totalorder %s19, 1
      %p81 = por %p79, %p80
      %p82 = scmp.ne.s32.totalorder %s71, %s72
      %p83 = scmp.eq.s32.totalorder %s19, 0
      %p84 = por %p82, %p83
      %p85 = scmp.ne.s32.totalorder %s71, %s72
      %p86 = scmp.eq.s32.totalorder %s20, 1
      %p87 = por %p85, %p86
      %p89 = scmp.ne.s32.totalorder %s72, %s88
      %p90 = scmp.eq.s32.totalorder %s20, 0
      %p91 = por %p89, %p90
      %s92 = sadd.s32 %s22, 2
      %s93 = sadd.s32 %s29, 2
      %s94 = ssub.s32 %s21, %s33
      %s95 = ssub.s32 %s92, %s93
      %s96 = sor.u32 %s94, %s95
      %p97 = scmp.eq.s32.totalorder %s96, 0
      %s99 = sadd.s32 %s98, 1
      %s100 = scalar_select %p97, %s98, %s99
      %p103 = pneg %p97
      %p104 = scmp.eq.s32.totalorder %s14, 1
      %p105 = por %p103, %p104
      %p106 = scmp.ne.s32.totalorder %s98, %s101
      %p107 = scmp.eq.s32.totalorder %s14, 0
      %p108 = por %p106, %p107
      %p109 = scmp.ne.s32.totalorder %s98, %s101
      %p110 = scmp.eq.s32.totalorder %s19, 1
      %p111 = por %p109, %p110
      %p112 = scmp.ne.s32.totalorder %s101, %s102
      %p113 = scmp.eq.s32.totalorder %s19, 0
      %p114 = por %p112, %p113
      %p115 = scmp.ne.s32.totalorder %s101, %s102
      %p116 = scmp.eq.s32.totalorder %s20, 1
      %p117 = por %p115, %p116
      %p119 = scmp.ne.s32.totalorder %s102, %s118
      %p120 = scmp.eq.s32.totalorder %s20, 0
      %p121 = por %p119, %p120
      %s122 = ssub.s32 %s21, %s33
      %s123 = ssub.s32 %s22, %s29
      %s124 = sor.u32 %s122, %s123
      %p125 = scmp.eq.s32.totalorder %s124, 0
      %s127 = sadd.s32 %s126, 1
      %s128 = scalar_select %p125, %s126, %s127
      %p131 = pneg %p125
      %p132 = scmp.eq.s32.totalorder %s14, 1
      %p133 = por %p131, %p132
      %p134 = scmp.ne.s32.totalorder %s126, %s129
      %p135 = scmp.eq.s32.totalorder %s14, 0
      %p136 = por %p134, %p135
      %p137 = scmp.ne.s32.totalorder %s126, %s129
      %p138 = scmp.eq.s32.totalorder %s19, 1
      %p139 = por %p137, %p138
      %p140 = scmp.ne.s32.totalorder %s129, %s130
      %p141 = scmp.eq.s32.totalorder %s19, 0
      %p142 = por %p140, %p141
      %p143 = scmp.ne.s32.totalorder %s129, %s130
      %p144 = scmp.eq.s32.totalorder %s20, 1
      %p145 = por %p143, %p144
      %p147 = scmp.ne.s32.totalorder %s130, %s146
      %p148 = scmp.eq.s32.totalorder %s20, 0
      %p149 = por %p147, %p148
      %s150 = ssub.s32 %s21, %s33
      %s151 = ssub.s32 %s22, %s29
      %s152 = sor.u32 %s150, %s151
      %p153 = scmp.eq.s32.totalorder %s152, 0
      %s155 = sadd.s32 %s154, 1
      %s156 = scalar_select %p153, %s154, %s155
      %p159 = pneg %p153
      %p160 = scmp.eq.s32.totalorder %s14, 1
      %p161 = por %p159, %p160
      %p162 = scmp.ne.s32.totalorder %s154, %s157
      %p163 = scmp.eq.s32.totalorder %s14, 0
      %p164 = por %p162, %p163
      %p165 = scmp.ne.s32.totalorder %s154, %s157
      %p166 = scmp.eq.s32.totalorder %s19, 1
      %p167 = por %p165, %p166
      %p168 = scmp.ne.s32.totalorder %s157, %s158
      %p169 = scmp.eq.s32.totalorder %s19, 0
      %p170 = por %p168, %p169
      %p171 = scmp.ne.s32.totalorder %s157, %s158
      %p172 = scmp.eq.s32.totalorder %s20, 1
      %p173 = por %p171, %p172
      %p175 = scmp.ne.s32.totalorder %s158, %s174
      %p176 = scmp.eq.s32.totalorder %s20, 0
      %p177 = por %p175, %p176
      %p178 = scmp.le.s32.totalorder 1, %s14
      %p179 = scmp.lt.s32.totalorder %s14, 3
      %p180 = pnand %p178, %p179
      %p181 = pneg %p180
      // Predicated region
      $region9: #{attention_forward.4} parent=5 // pred_check
        _
      $region10: #{attention_forward.4} parent=5 // pred_check_branch
        %183 = sbr.rel (%p180) target = $region12
      $region11: #{attention_forward.4} parent=5 // pred_region
        %s184 = ssub.s32 %s14, 1
      $region12: #{attention_forward.4} parent=5 // pred_fallthru
        _
      %p185 = scmp.lt.s32.totalorder %s14, 2
      // Predicated region
      $region13: #{attention_forward.4} parent=5 // pred_check
        %p186 = pneg %p185
      $region14: #{attention_forward.4} parent=5 // pred_check_branch
        %188 = sbr.rel (%p186) target = $region16
      $region15: #{attention_forward.4} parent=5 // pred_region
        // Predicated region
        $region17: #{attention_forward.4} parent=15 // pred_check
          %p189 = pneg %p48
        $region18: #{attention_forward.4} parent=15 // pred_check_branch
          %191 = sbr.rel (%p189) target = $region20
        $region19: #{attention_forward.4} parent=15 // pred_region
          %s192 = sand.u32 %s38, 1
          %s193 = sand.u32 %s38, 1
          %s194 = smul.addr %s193, 16
          %s195 = scalar_lea.vmem [#allocation2], %s194
          %s196 = smul.u32 2, %s22
          %s197 = smul.addr %s21, 12
          %s198 = sadd.s32 %s196, %s197
          %s199 = smul.addr %s198, 4
          %s200 = scalar_lea.vmem %s0, %s199
          // Predicated region
          $region21: #{attention_forward.4} parent=19 // pred_check
            _
          $region22: #{attention_forward.4} parent=19 // pred_check_branch
            %202 = sbr.rel (0) target = $region24
          $region23: #{attention_forward.4} parent=19 // pred_region
            // Predicated region
            $region25: #{attention_forward.4} parent=23 // pred_check
              _
            $region26: #{attention_forward.4} parent=23 // pred_check_branch
              %204 = sbr.rel (0) target = $region28
            $region27: #{attention_forward.4} parent=23 // pred_region
              // Predicated region
              $region40: #{attention_forward.4} parent=27 // pred_check
                _
              $region41: #{attention_forward.4} parent=27 // pred_check_branch
                %222 = sbr.rel (0) target = $region43
              $region42: #{attention_forward.4} parent=27 // pred_region
                loop: start=0, step=1, limit=1
                $region44: #{attention_forward.4} parent=42 // loop_pre_header
                  _
                $region45: #{attention_forward.4} parent=42 // loop_header
                  %s224 = sphi 0, %s228
                  %p225 = scmp.ge.s32.totalorder %s224, 1
                  %s229 = sphi %s200, %s200
                  %s230 = sphi %s195, %s195
                $region46: #{attention_forward.4} parent=42 // loop_header_branch
                  %227 = sbr.rel (%p225) target = $region50
                $region47: #{attention_forward.4} parent=42 // loop_body
                  %v231 = vld [vmem:[%s229] sm:$0xff]
                  %232 = vst [vmem:[%s230] sm:$0xff] %v231
                  %v233 = vld [vmem:[%s229 + $0x18] sm:$0xff]
                  %234 = vst [vmem:[%s230 + $0x8] sm:$0xff] %v233
                $region48: #{attention_forward.4} parent=42 // loop_footer
                  %s228 = sadd.s32 1, %s224
                $region49: #{attention_forward.4} parent=42 // loop_footer_branch
                  %223 = sbr.rel target = $region45
                $region50: #{attention_forward.4} parent=42 // loop_exit
                  _
              $region43: #{attention_forward.4} parent=27 // pred_fallthru
                _
              // Predicated region
              $region51: #{attention_forward.4} parent=27 // pred_check
                _
              $region52: #{attention_forward.4} parent=27 // pred_check_branch
                %236 = sbr.rel target = $region54
              $region53: #{attention_forward.4} parent=27 // pred_region
                _
              $region54: #{attention_forward.4} parent=27 // pred_fallthru
                _
            $region28: #{attention_forward.4} parent=23 // pred_fallthru
              _
            // Predicated region
            $region29: #{attention_forward.4} parent=23 // pred_check
              _
            $region30: #{attention_forward.4} parent=23 // pred_check_branch
              %206 = sbr.rel target = $region32
            $region31: #{attention_forward.4} parent=23 // pred_region
              %s208 = ssub.s32 256, 1
              loop: start=0, step=1, limit=1
              $region33: #{attention_forward.4} parent=31 // loop_pre_header
                _
              $region34: #{attention_forward.4} parent=31 // loop_header
                %s210 = sphi 0, %s214
                %p211 = scmp.ge.s32.totalorder %s210, 1
                %s215 = sphi %s200, %s200
                %s216 = sphi %s195, %s195
              $region35: #{attention_forward.4} parent=31 // loop_header_branch
                %213 = sbr.rel (%p211) target = $region39
              $region36: #{attention_forward.4} parent=31 // loop_body
                %v217 = vld [vmem:[%s215] sm:%s208]
                %218 = vst [vmem:[%s216] sm:%s208] %v217
                %v219 = vld [vmem:[%s215 + $0x18] sm:%s208]
                %220 = vst [vmem:[%s216 + $0x8] sm:%s208] %v219
              $region37: #{attention_forward.4} parent=31 // loop_footer
                %s214 = sadd.s32 1, %s210
              $region38: #{attention_forward.4} parent=31 // loop_footer_branch
                %209 = sbr.rel target = $region34
              $region39: #{attention_forward.4} parent=31 // loop_exit
                _
            $region32: #{attention_forward.4} parent=23 // pred_fallthru
              _
          $region24: #{attention_forward.4} parent=19 // pred_fallthru
            _
          %237 = vnop
        $region20: #{attention_forward.4} parent=15 // pred_fallthru
          _
        // Predicated region
        $region55: #{attention_forward.4} parent=15 // pred_check
          %p238 = pneg %p78
        $region56: #{attention_forward.4} parent=15 // pred_check_branch
          %240 = sbr.rel (%p238) target = $region58
        $region57: #{attention_forward.4} parent=15 // pred_region
          %s241 = sand.u32 %s68, 1
          %s242 = sand.u32 %s68, 1
          %s243 = smul.addr %s242, 16
          %s244 = scalar_lea.vmem [#allocation3], %s243
          %s245 = sadd.s32 %s22, 1
          %s246 = smul.u32 2, %s245
          %s247 = smul.addr %s21, 12
          %s248 = sadd.s32 %s246, %s247
          %s249 = smul.addr %s248, 4
          %s250 = scalar_lea.vmem %s1, %s249
          // Predicated region
          $region59: #{attention_forward.4} parent=57 // pred_check
            _
          $region60: #{attention_forward.4} parent=57 // pred_check_branch
            %252 = sbr.rel (0) target = $region62
          $region61: #{attention_forward.4} parent=57 // pred_region
            // Predicated region
            $region63: #{attention_forward.4} parent=61 // pred_check
              _
            $region64: #{attention_forward.4} parent=61 // pred_check_branch
              %254 = sbr.rel (0) target = $region66
            $region65: #{attention_forward.4} parent=61 // pred_region
              // Predicated region
              $region78: #{attention_forward.4} parent=65 // pred_check
                _
              $region79: #{attention_forward.4} parent=65 // pred_check_branch
                %272 = sbr.rel (0) target = $region81
              $region80: #{attention_forward.4} parent=65 // pred_region
                loop: start=0, step=1, limit=1
                $region82: #{attention_forward.4} parent=80 // loop_pre_header
                  _
                $region83: #{attention_forward.4} parent=80 // loop_header
                  %s274 = sphi 0, %s278
                  %p275 = scmp.ge.s32.totalorder %s274, 1
                  %s279 = sphi %s250, %s250
                  %s280 = sphi %s244, %s244
                $region84: #{attention_forward.4} parent=80 // loop_header_branch
                  %277 = sbr.rel (%p275) target = $region88
                $region85: #{attention_forward.4} parent=80 // loop_body
                  %v281 = vld [vmem:[%s279] sm:$0xff]
                  %282 = vst [vmem:[%s280] sm:$0xff] %v281
                  %v283 = vld [vmem:[%s279 + $0x18] sm:$0xff]
                  %284 = vst [vmem:[%s280 + $0x8] sm:$0xff] %v283
                $region86: #{attention_forward.4} parent=80 // loop_footer
                  %s278 = sadd.s32 1, %s274
                $region87: #{attention_forward.4} parent=80 // loop_footer_branch
                  %273 = sbr.rel target = $region83
                $region88: #{attention_forward.4} parent=80 // loop_exit
                  _
              $region81: #{attention_forward.4} parent=65 // pred_fallthru
                _
              // Predicated region
              $region89: #{attention_forward.4} parent=65 // pred_check
                _
              $region90: #{attention_forward.4} parent=65 // pred_check_branch
                %286 = sbr.rel target = $region92
              $region91: #{attention_forward.4} parent=65 // pred_region
                _
              $region92: #{attention_forward.4} parent=65 // pred_fallthru
                _
            $region66: #{attention_forward.4} parent=61 // pred_fallthru
              _
            // Predicated region
            $region67: #{attention_forward.4} parent=61 // pred_check
              _
            $region68: #{attention_forward.4} parent=61 // pred_check_branch
              %256 = sbr.rel target = $region70
            $region69: #{attention_forward.4} parent=61 // pred_region
              %s258 = ssub.s32 256, 1
              loop: start=0, step=1, limit=1
              $region71: #{attention_forward.4} parent=69 // loop_pre_header
                _
              $region72: #{attention_forward.4} parent=69 // loop_header
                %s260 = sphi 0, %s264
                %p261 = scmp.ge.s32.totalorder %s260, 1
                %s265 = sphi %s250, %s250
                %s266 = sphi %s244, %s244
              $region73: #{attention_forward.4} parent=69 // loop_header_branch
                %263 = sbr.rel (%p261) target = $region77
              $region74: #{attention_forward.4} parent=69 // loop_body
                %v267 = vld [vmem:[%s265] sm:%s258]
                %268 = vst [vmem:[%s266] sm:%s258] %v267
                %v269 = vld [vmem:[%s265 + $0x18] sm:%s258]
                %270 = vst [vmem:[%s266 + $0x8] sm:%s258] %v269
              $region75: #{attention_forward.4} parent=69 // loop_footer
                %s264 = sadd.s32 1, %s260
              $region76: #{attention_forward.4} parent=69 // loop_footer_branch
                %259 = sbr.rel target = $region72
              $region77: #{attention_forward.4} parent=69 // loop_exit
                _
            $region70: #{attention_forward.4} parent=61 // pred_fallthru
              _
          $region62: #{attention_forward.4} parent=57 // pred_fallthru
            _
          %287 = vnop
        $region58: #{attention_forward.4} parent=15 // pred_fallthru
          _
        // Predicated region
        $region93: #{attention_forward.4} parent=15 // pred_check
          %p288 = pneg %p108
        $region94: #{attention_forward.4} parent=15 // pred_check_branch
          %290 = sbr.rel (%p288) target = $region96
        $region95: #{attention_forward.4} parent=15 // pred_region
          %s291 = sand.u32 %s98, 1
          %s292 = sand.u32 %s98, 1
          %s293 = smul.addr %s292, 16
          %s294 = scalar_lea.vmem [#allocation4], %s293
          %s295 = sadd.s32 %s22, 2
          %s296 = smul.u32 2, %s295
          %s297 = smul.addr %s21, 12
          %s298 = sadd.s32 %s296, %s297
          %s299 = smul.addr %s298, 4
          %s300 = scalar_lea.vmem %s2, %s299
          // Predicated region
          $region97: #{attention_forward.4} parent=95 // pred_check
            _
          $region98: #{attention_forward.4} parent=95 // pred_check_branch
            %302 = sbr.rel (0) target = $region100
          $region99: #{attention_forward.4} parent=95 // pred_region
            // Predicated region
            $region101: #{attention_forward.4} parent=99 // pred_check
              _
            $region102: #{attention_forward.4} parent=99 // pred_check_branch
              %304 = sbr.rel (0) target = $region104
            $region103: #{attention_forward.4} parent=99 // pred_region
              // Predicated region
              $region116: #{attention_forward.4} parent=103 // pred_check
                _
              $region117: #{attention_forward.4} parent=103 // pred_check_branch
                %322 = sbr.rel (0) target = $region119
              $region118: #{attention_forward.4} parent=103 // pred_region
                loop: start=0, step=1, limit=1
                $region120: #{attention_forward.4} parent=118 // loop_pre_header
                  _
                $region121: #{attention_forward.4} parent=118 // loop_header
                  %s324 = sphi 0, %s328
                  %p325 = scmp.ge.s32.totalorder %s324, 1
                  %s329 = sphi %s300, %s300
                  %s330 = sphi %s294, %s294
                $region122: #{attention_forward.4} parent=118 // loop_header_branch
                  %327 = sbr.rel (%p325) target = $region126
                $region123: #{attention_forward.4} parent=118 // loop_body
                  %v331 = vld [vmem:[%s329] sm:$0xff]
                  %332 = vst [vmem:[%s330] sm:$0xff] %v331
                  %v333 = vld [vmem:[%s329 + $0x18] sm:$0xff]
                  %334 = vst [vmem:[%s330 + $0x8] sm:$0xff] %v333
                $region124: #{attention_forward.4} parent=118 // loop_footer
                  %s328 = sadd.s32 1, %s324
                $region125: #{attention_forward.4} parent=118 // loop_footer_branch
                  %323 = sbr.rel target = $region121
                $region126: #{attention_forward.4} parent=118 // loop_exit
                  _
              $region119: #{attention_forward.4} parent=103 // pred_fallthru
                _
              // Predicated region
              $region127: #{attention_forward.4} parent=103 // pred_check
                _
              $region128: #{attention_forward.4} parent=103 // pred_check_branch
                %336 = sbr.rel target = $region130
              $region129: #{attention_forward.4} parent=103 // pred_region
                _
              $region130: #{attention_forward.4} parent=103 // pred_fallthru
                _
            $region104: #{attention_forward.4} parent=99 // pred_fallthru
              _
            // Predicated region
            $region105: #{attention_forward.4} parent=99 // pred_check
              _
            $region106: #{attention_forward.4} parent=99 // pred_check_branch
              %306 = sbr.rel target = $region108
            $region107: #{attention_forward.4} parent=99 // pred_region
              %s308 = ssub.s32 256, 1
              loop: start=0, step=1, limit=1
              $region109: #{attention_forward.4} parent=107 // loop_pre_header
                _
              $region110: #{attention_forward.4} parent=107 // loop_header
                %s310 = sphi 0, %s314
                %p311 = scmp.ge.s32.totalorder %s310, 1
                %s315 = sphi %s300, %s300
                %s316 = sphi %s294, %s294
              $region111: #{attention_forward.4} parent=107 // loop_header_branch
                %313 = sbr.rel (%p311) target = $region115
              $region112: #{attention_forward.4} parent=107 // loop_body
                %v317 = vld [vmem:[%s315] sm:%s308]
                %318 = vst [vmem:[%s316] sm:%s308] %v317
                %v319 = vld [vmem:[%s315 + $0x18] sm:%s308]
                %320 = vst [vmem:[%s316 + $0x8] sm:%s308] %v319
              $region113: #{attention_forward.4} parent=107 // loop_footer
                %s314 = sadd.s32 1, %s310
              $region114: #{attention_forward.4} parent=107 // loop_footer_branch
                %309 = sbr.rel target = $region110
              $region115: #{attention_forward.4} parent=107 // loop_exit
                _
            $region108: #{attention_forward.4} parent=99 // pred_fallthru
              _
          $region100: #{attention_forward.4} parent=95 // pred_fallthru
            _
          %337 = vnop
        $region96: #{attention_forward.4} parent=15 // pred_fallthru
          _
      $region16: #{attention_forward.4} parent=5 // pred_fallthru
        _
      %p338 = scmp.le.s32.totalorder 1, %s14
      %p339 = scmp.lt.s32.totalorder %s14, 3
      %p340 = pnand %p338, %p339
      %p341 = pneg %p340
      // Predicated region
      $region131: #{attention_forward.4} parent=5 // pred_check
        _
      $region132: #{attention_forward.4} parent=5 // pred_check_branch
        %343 = sbr.rel (%p340) target = $region134
      $region133: #{attention_forward.4} parent=5 // pred_region
        %s344 = ssub.s32 %s14, 1
        %s345 = sand.u32 %s41, 1
        %s346 = sand.u32 %s41, 1
        %s347 = smul.addr %s346, 16
        %s348 = scalar_lea.vmem [#allocation2], %s347
        // Predicated region
        $region135: #{attention_forward.4} parent=133 // pred_check
          %p349 = pneg %p54
        $region136: #{attention_forward.4} parent=133 // pred_check_branch
          %351 = sbr.rel (%p349) target = $region138
        $region137: #{attention_forward.4} parent=133 // pred_region
          _
        $region138: #{attention_forward.4} parent=133 // pred_fallthru
          _
        %s352 = sand.u32 %s71, 1
        %s353 = sand.u32 %s71, 1
        %s354 = smul.addr %s353, 16
        %s355 = scalar_lea.vmem [#allocation3], %s354
        // Predicated region
        $region139: #{attention_forward.4} parent=133 // pred_check
          %p356 = pneg %p84
        $region140: #{attention_forward.4} parent=133 // pred_check_branch
          %358 = sbr.rel (%p356) target = $region142
        $region141: #{attention_forward.4} parent=133 // pred_region
          _
        $region142: #{attention_forward.4} parent=133 // pred_fallthru
          _
        %s359 = sand.u32 %s101, 1
        %s360 = sand.u32 %s101, 1
        %s361 = smul.addr %s360, 16
        %s362 = scalar_lea.vmem [#allocation4], %s361
        // Predicated region
        $region143: #{attention_forward.4} parent=133 // pred_check
          %p363 = pneg %p114
        $region144: #{attention_forward.4} parent=133 // pred_check_branch
          %365 = sbr.rel (%p363) target = $region146
        $region145: #{attention_forward.4} parent=133 // pred_region
          _
        $region146: #{attention_forward.4} parent=133 // pred_fallthru
          _
        %s366 = sand.u32 %s41, 1
        %s367 = sand.u32 %s41, 1
        %s368 = smul.addr %s367, 16
        %s369 = scalar_lea.vmem [#allocation2], %s368
        %p370 = pneg %p54
        %p371 = pneg %p51
        %s372 = sand.u32 %s71, 1
        %s373 = sand.u32 %s71, 1
        %s374 = smul.addr %s373, 16
        %s375 = scalar_lea.vmem [#allocation3], %s374
        %p376 = pneg %p84
        %p377 = pneg %p81
        %s378 = sand.u32 %s101, 1
        %s379 = sand.u32 %s101, 1
        %s380 = smul.addr %s379, 16
        %s381 = scalar_lea.vmem [#allocation4], %s380
        %p382 = pneg %p114
        %p383 = pneg %p111
        %p384 = pneg %p142
        %p385 = pneg %p139
        %s386 = sand.u32 %s129, 1
        %s387 = scalar_lea.sflag [#allocation6], %s386
        %s388 = sand.u32 %s129, 1
        %s389 = smul.addr %s388, 32
        %s390 = scalar_lea.vmem [#allocation5], %s389
        %p391 = pneg %p170
        %p392 = pneg %p167
        %s393 = smul.u32 2, %s24
        %p394 = scmp.lt.s32.totalorder %s23, 1
        %s395 = scalar_select %p394, %s23, 1
        %p396 = scmp.lt.s32.totalorder %s393, 1
        %s397 = scalar_select %p396, %s393, 1
        %s398 = smul.addr %s395, 4
        %s399 = sadd.s32 %s397, %s398
        %s400 = smul.addr %s399, 4
        %s401 = scalar_lea.vmem %s4, %s400
        %s402 = smul.u32 2, %s24
        %s403 = sadd.s32 %s24, 1
        %s404 = smul.u32 2, %s403
        %s405 = sadd.s32 %s24, 2
        %s406 = smul.u32 2, %s405
        %s407 = smul.u32 2, %s24
        %s408 = smul.u32 2, %s24
        %p409 = scmp.lt.s32.totalorder %s23, 1
        %s410 = scalar_select %p409, %s23, 1
        %p411 = scmp.lt.s32.totalorder %s408, 1
        %s412 = scalar_select %p411, %s408, 1
        %s413 = smul.addr %s410, 4
        %s414 = sadd.s32 %s412, %s413
        %s415 = smul.addr %s414, 4
        %s416 = scalar_lea.vmem %s4, %s415
        %s417 = smul.u32 2, %s24
        %v419 = vld [vmem:[%s348] sm:$0xff]
        %v420 = vld [vmem:[%s348 + $0x8] sm:$0xff]
        %v421 = vld [vmem:[%s355] sm:$0xff]
        %v422 = vld [vmem:[%s355 + $0x8] sm:$0xff]
        %v423 = vld [vmem:[%s362] sm:$0xff]
        %v424 = vld [vmem:[%s362 + $0x8] sm:$0xff]
        %v427 = vunpack.c.l.b16 %v419
        %v428 = vunpack.c.l.b16 %v420
        %v429 = vpack.c.b16 %v428, %v427
        %v433 = vunpack.c.l.b16 %v421
        %v434 = vunpack.c.l.b16 %v422
        %v435 = vpack.c.b16 %v434, %v433
        %437 = vmatprep.subr.bf16.mxu0 0
        %438 = vmatpush1.bf16.xpose.msra.mxu0 0
        %439 = vmatprep.subr.bf16.mxu0 0
        %440 = vmatpush1.bf16.xpose.msra.mxu0 0
        %441 = vmatprep.subr.bf16.mxu0 0
        %442 = vmatpush1.bf16.xpose.msra.mxu0 0
        %443 = vmatprep.subr.bf16.mxu0 0
        %444 = vmatpush1.bf16.xpose.msra.mxu0 0
        %445 = vmatprep.subr.bf16.mxu0 0
        %446 = vmatpush1.bf16.xpose.msra.mxu0 0
        %447 = vmatprep.subr.bf16.mxu0 0
        %448 = vmatpush1.bf16.xpose.msra.mxu0 0
        %449 = vmatprep.subr.bf16.mxu0 0
        %450 = vmatpush1.bf16.xpose.msra.mxu0 0
        %451 = vmatprep.subr.bf16.mxu0 0
        %452 = vmatpush1.bf16.xpose.msra.mxu0 %v435
        %453 = vmatprep.subr.bf16.mxu0 0
        %454 = vmatpush2.bf16.xpose.msra.mxu0 0
        %455 = vmatprep.subr.bf16.mxu0 0
        %456 = vmatpush2.bf16.xpose.msra.mxu0 0
        %457 = vmatprep.subr.bf16.mxu0 0
        %458 = vmatpush2.bf16.xpose.msra.mxu0 0
        %459 = vmatprep.subr.bf16.mxu0 0
        %460 = vmatpush2.bf16.xpose.msra.mxu0 0
        %461 = vmatprep.subr.bf16.mxu0 0
        %462 = vmatpush2.bf16.xpose.msra.mxu0 0
        %463 = vmatprep.subr.bf16.mxu0 0
        %464 = vmatpush2.bf16.xpose.msra.mxu0 0
        %465 = vmatprep.subr.bf16.mxu0 0
        %466 = vmatpush2.bf16.xpose.msra.mxu0 0
        %467 = vmatprep.subr.bf16.mxu0 0
        %468 = vmatpush2.bf16.xpose.msra.mxu0 0
        %469 = vmatprep.mubr.bf16.mxu0 0
        %470 = vmatmul.mubr.bf16.gmra.mxu0 %v429
        %v471 = vpop.f32.mrf.mxu0
        %v472 = vadd.f32 0.0, %v471
        %v473 = vpop.f32.mrf.mxu0
        %v474 = vpop.f32.mrf.mxu0
        %v475 = vadd.f32 0.0, %v474
        %v476 = vpop.f32.mrf.mxu0
        %477 = vdwg.mxu0
        %v478 = vmul.f32 %v472, 0.088388346
        %v479 = vmul.f32 %v475, 0.088388346
        %vm480 = vcmask 130048
        %v481 = vsel %vm480, %v478, -inf
        %482 = vmax.xlane.f32.xlu0 %v481
        %v483 = vpop.xlane.xlu0 %482
        %v484 = vsel %vm480, %v479, -inf
        %485 = vmax.xlane.f32.xlu0 %v484
        %v486 = vpop.xlane.xlu0 %485
        %v487 = vsub.f32 %v478, %v483
        %v488 = vsub.f32 %v479, %v486
        %v489 = vmul.f32 %v487, 1.442695
        %v490 = vpow.pop %v489
        %v491 = vmul.f32 %v488, 1.442695
        %v492 = vpow.pop %v491
        %v493 = vsel %vm480, %v490, 0.0
        %494 = vadd.xlane.f32.xlu0 %v493
        %v495 = vpop.xlane.xlu0 %494
        %v496 = vsel %vm480, %v492, 0.0
        %497 = vadd.xlane.f32.xlu0 %v496
        %v498 = vpop.xlane.xlu0 %497
        %v499 = vrcp.pop %v495
        %v500 = vrcp.pop %v498
        %v501 = vmul.f32 %v490, %v499
        %v502 = vmul.f32 %v492, %v500
        %503 = vst.msk [vmem:[%s390] sm:$0xff] %vm480, %v501
        %504 = vst.msk [vmem:[%s390 + $0x8] sm:$0xff] %vm480, %v502
        %v505 = vpack.c.bf16 %v502, %v501
        %v508 = vunpack.c.l.b16 %v423
        %v509 = vunpack.c.l.b16 %v424
        %v510 = vpack.c.b16 %v509, %v508
        %v513 = vsel %vm480, %v505, 0
        %515 = vmatprep.subr.bf16.mxu0 0
        %516 = vmatpush1.bf16.msra.mxu0 0
        %517 = vmatprep.subr.bf16.mxu0 0
        %518 = vmatpush1.bf16.msra.mxu0 0
        %519 = vmatprep.subr.bf16.mxu0 0
        %520 = vmatpush1.bf16.msra.mxu0 0
        %521 = vmatprep.subr.bf16.mxu0 0
        %522 = vmatpush1.bf16.msra.mxu0 0
        %523 = vmatprep.subr.bf16.mxu0 0
        %524 = vmatpush1.bf16.msra.mxu0 0
        %525 = vmatprep.subr.bf16.mxu0 0
        %526 = vmatpush1.bf16.msra.mxu0 0
        %527 = vmatprep.subr.bf16.mxu0 0
        %528 = vmatpush1.bf16.msra.mxu0 0
        %529 = vmatprep.subr.bf16.mxu0 0
        %530 = vmatpush1.bf16.msra.mxu0 %v510
        %531 = vmatprep.subr.bf16.mxu0 0
        %532 = vmatpush2.bf16.msra.mxu0 0
        %533 = vmatprep.subr.bf16.mxu0 0
        %534 = vmatpush2.bf16.msra.mxu0 0
        %535 = vmatprep.subr.bf16.mxu0 0
        %536 = vmatpush2.bf16.msra.mxu0 0
        %537 = vmatprep.subr.bf16.mxu0 0
        %538 = vmatpush2.bf16.msra.mxu0 0
        %539 = vmatprep.subr.bf16.mxu0 0
        %540 = vmatpush2.bf16.msra.mxu0 0
        %541 = vmatprep.subr.bf16.mxu0 0
        %542 = vmatpush2.bf16.msra.mxu0 0
        %543 = vmatprep.subr.bf16.mxu0 0
        %544 = vmatpush2.bf16.msra.mxu0 0
        %545 = vmatprep.subr.bf16.mxu0 0
        %546 = vmatpush2.bf16.msra.mxu0 0
        %547 = vmatprep.mubr.bf16.mxu0 0
        %548 = vmatmul.mubr.bf16.gmra.mxu0 %v513
        %v549 = vpop.f32.mrf.mxu0
        %v550 = vadd.f32 0.0, %v549
        %v551 = vpop.f32.mrf.mxu0
        %v552 = vpop.f32.mrf.mxu0
        %v553 = vadd.f32 0.0, %v552
        %v554 = vpop.f32.mrf.mxu0
        %555 = vdwg.mxu0
        %v556 = vunpack.c.h.b16 %v419
        %v557 = vunpack.c.h.b16 %v420
        %v558 = vpack.c.b16 %v557, %v556
        %v560 = vunpack.c.h.b16 %v421
        %v561 = vunpack.c.h.b16 %v422
        %v562 = vpack.c.b16 %v561, %v560
        %564 = vmatprep.subr.bf16.mxu0 0
        %565 = vmatpush1.bf16.xpose.msra.mxu0 0
        %566 = vmatprep.subr.bf16.mxu0 0
        %567 = vmatpush1.bf16.xpose.msra.mxu0 0
        %568 = vmatprep.subr.bf16.mxu0 0
        %569 = vmatpush1.bf16.xpose.msra.mxu0 0
        %570 = vmatprep.subr.bf16.mxu0 0
        %571 = vmatpush1.bf16.xpose.msra.mxu0 0
        %572 = vmatprep.subr.bf16.mxu0 0
        %573 = vmatpush1.bf16.xpose.msra.mxu0 0
        %574 = vmatprep.subr.bf16.mxu0 0
        %575 = vmatpush1.bf16.xpose.msra.mxu0 0
        %576 = vmatprep.subr.bf16.mxu0 0
        %577 = vmatpush1.bf16.xpose.msra.mxu0 0
        %578 = vmatprep.subr.bf16.mxu0 0
        %579 = vmatpush1.bf16.xpose.msra.mxu0 %v562
        %580 = vmatprep.subr.bf16.mxu0 0
        %581 = vmatpush2.bf16.xpose.msra.mxu0 0
        %582 = vmatprep.subr.bf16.mxu0 0
        %583 = vmatpush2.bf16.xpose.msra.mxu0 0
        %584 = vmatprep.subr.bf16.mxu0 0
        %585 = vmatpush2.bf16.xpose.msra.mxu0 0
        %586 = vmatprep.subr.bf16.mxu0 0
        %587 = vmatpush2.bf16.xpose.msra.mxu0 0
        %588 = vmatprep.subr.bf16.mxu0 0
        %589 = vmatpush2.bf16.xpose.msra.mxu0 0
        %590 = vmatprep.subr.bf16.mxu0 0
        %591 = vmatpush2.bf16.xpose.msra.mxu0 0
        %592 = vmatprep.subr.bf16.mxu0 0
        %593 = vmatpush2.bf16.xpose.msra.mxu0 0
        %594 = vmatprep.subr.bf16.mxu0 0
        %595 = vmatpush2.bf16.xpose.msra.mxu0 0
        %596 = vmatprep.mubr.bf16.mxu0 0
        %597 = vmatmul.mubr.bf16.gmra.mxu0 %v558
        %v598 = vpop.f32.mrf.mxu0
        %v599 = vadd.f32 0.0, %v598
        %v600 = vpop.f32.mrf.mxu0
        %v601 = vpop.f32.mrf.mxu0
        %v602 = vadd.f32 0.0, %v601
        %v603 = vpop.f32.mrf.mxu0
        %604 = vdwg.mxu0
        %v605 = vmul.f32 %v599, 0.088388346
        %v606 = vmul.f32 %v602, 0.088388346
        %v607 = vsel %vm480, %v605, -inf
        %608 = vmax.xlane.f32.xlu0 %v607
        %v609 = vpop.xlane.xlu0 %608
        %v610 = vsel %vm480, %v606, -inf
        %611 = vmax.xlane.f32.xlu0 %v610
        %v612 = vpop.xlane.xlu0 %611
        %v613 = vsub.f32 %v605, %v609
        %v614 = vsub.f32 %v606, %v612
        %v615 = vmul.f32 %v613, 1.442695
        %v616 = vpow.pop %v615
        %v617 = vmul.f32 %v614, 1.442695
        %v618 = vpow.pop %v617
        %v619 = vsel %vm480, %v616, 0.0
        %620 = vadd.xlane.f32.xlu0 %v619
        %v621 = vpop.xlane.xlu0 %620
        %v622 = vsel %vm480, %v618, 0.0
        %623 = vadd.xlane.f32.xlu0 %v622
        %v624 = vpop.xlane.xlu0 %623
        %v625 = vrcp.pop %v621
        %v626 = vrcp.pop %v624
        %v627 = vmul.f32 %v616, %v625
        %v628 = vmul.f32 %v618, %v626
        %s629 = scalar_lea.vmem %s390, 16 [#allocation5]
        %630 = vst.msk [vmem:[%s629] sm:$0xff] %vm480, %v627
        %631 = vst.msk [vmem:[%s629 + $0x8] sm:$0xff] %vm480, %v628
        %v632 = vpack.c.bf16 %v628, %v627
        %v633 = vunpack.c.h.b16 %v423
        %v634 = vunpack.c.h.b16 %v424
        %v635 = vpack.c.b16 %v634, %v633
        %v638 = vsel %vm480, %v632, 0
        %640 = vmatprep.subr.bf16.mxu0 0
        %641 = vmatpush1.bf16.msra.mxu0 0
        %642 = vmatprep.subr.bf16.mxu0 0
        %643 = vmatpush1.bf16.msra.mxu0 0
        %644 = vmatprep.subr.bf16.mxu0 0
        %645 = vmatpush1.bf16.msra.mxu0 0
        %646 = vmatprep.subr.bf16.mxu0 0
        %647 = vmatpush1.bf16.msra.mxu0 0
        %648 = vmatprep.subr.bf16.mxu0 0
        %649 = vmatpush1.bf16.msra.mxu0 0
        %650 = vmatprep.subr.bf16.mxu0 0
        %651 = vmatpush1.bf16.msra.mxu0 0
        %652 = vmatprep.subr.bf16.mxu0 0
        %653 = vmatpush1.bf16.msra.mxu0 0
        %654 = vmatprep.subr.bf16.mxu0 0
        %655 = vmatpush1.bf16.msra.mxu0 %v635
        %656 = vmatprep.subr.bf16.mxu0 0
        %657 = vmatpush2.bf16.msra.mxu0 0
        %658 = vmatprep.subr.bf16.mxu0 0
        %659 = vmatpush2.bf16.msra.mxu0 0
        %660 = vmatprep.subr.bf16.mxu0 0
        %661 = vmatpush2.bf16.msra.mxu0 0
        %662 = vmatprep.subr.bf16.mxu0 0
        %663 = vmatpush2.bf16.msra.mxu0 0
        %664 = vmatprep.subr.bf16.mxu0 0
        %665 = vmatpush2.bf16.msra.mxu0 0
        %666 = vmatprep.subr.bf16.mxu0 0
        %667 = vmatpush2.bf16.msra.mxu0 0
        %668 = vmatprep.subr.bf16.mxu0 0
        %669 = vmatpush2.bf16.msra.mxu0 0
        %670 = vmatprep.subr.bf16.mxu0 0
        %671 = vmatpush2.bf16.msra.mxu0 0
        %672 = vmatprep.mubr.bf16.mxu0 0
        %673 = vmatmul.mubr.bf16.gmra.mxu0 %v638
        %v674 = vpop.f32.mrf.mxu0
        %v675 = vadd.f32 0.0, %v674
        %v676 = vpop.f32.mrf.mxu0
        %v677 = vpop.f32.mrf.mxu0
        %v678 = vadd.f32 0.0, %v677
        %v679 = vpop.f32.mrf.mxu0
        %680 = vdwg.mxu0
        %v681 = vpack.c.bf16 %v553, %v550
        %v682 = vpack.c.bf16 %v678, %v675
        %v685 = vunpack.c.l.b16 %v681
        %v686 = vunpack.c.l.b16 %v682
        %v687 = vunpack.c.h.b16 %v681
        %v688 = vunpack.c.h.b16 %v682
        %v689 = vpack.c.b16 %v686, %v685
        %v690 = vpack.c.b16 %v688, %v687
        %693 = vst [vmem:[%s416] sm:$0xff] %v689
        %694 = vst [vmem:[%s416 + $0x8] sm:$0xff] %v690
        %s695 = sand.u32 %s129, 1
        %s696 = scalar_lea.sflag [#allocation6], %s695
        %s697 = sand.u32 %s129, 1
        %s698 = smul.addr %s697, 32
        %s699 = scalar_lea.vmem [#allocation5], %s698
        %s700 = smul.u32 2, %s24
        %p701 = scmp.lt.s32.totalorder %s23, 1
        %s702 = scalar_select %p701, %s23, 1
        %p703 = scmp.lt.s32.totalorder %s700, 1
        %s704 = scalar_select %p703, %s700, 1
        %s705 = smul.addr %s702, 4
        %s706 = sadd.s32 %s704, %s705
        %s707 = smul.addr %s706, 4
        %s708 = scalar_lea.vmem %s4, %s707
        // Predicated region
        $region147: #{attention_forward.4} parent=133 // pred_check
          %p709 = pneg %p139
        $region148: #{attention_forward.4} parent=133 // pred_check_branch
          %711 = sbr.rel (%p709) target = $region150
        $region149: #{attention_forward.4} parent=133 // pred_region
          %s712 = smul.u32 2, %s24
          %s714 = ssub.s32 512, 512
          %715 = vsyncadd %s696, %s714
          %s716 = smul.addr %s712, 2
          %s717 = smul.addr %s23, 4
          %s718 = sadd.s32 %s716, %s717
          %s719 = smul.addr %s718, 128
          %s720 = scalar_lea.hbm %s3, %s719
          %s721 = sshll.u32 %s699, 4
          %s722 = int_to_ptr.vmem [resolvable:$true] %s721
          %727 = dma.vmem_to_hbm [thread:$0]  %s722, 512, %s720, %s696, 128, 128, 8
        $region150: #{attention_forward.4} parent=133 // pred_fallthru
          _
        // Predicated region
        $region151: #{attention_forward.4} parent=133 // pred_check
          %p728 = pneg %p167
        $region152: #{attention_forward.4} parent=133 // pred_check_branch
          %730 = sbr.rel (%p728) target = $region154
        $region153: #{attention_forward.4} parent=133 // pred_region
          %s731 = smul.u32 2, %s24
        $region154: #{attention_forward.4} parent=133 // pred_fallthru
          _
      $region134: #{attention_forward.4} parent=5 // pred_fallthru
        _
      %p732 = scmp.le.s32.totalorder 2, %s14
      // Predicated region
      $region155: #{attention_forward.4} parent=5 // pred_check
        %p733 = pneg %p732
      $region156: #{attention_forward.4} parent=5 // pred_check_branch
        %735 = sbr.rel (%p733) target = $region158
      $region157: #{attention_forward.4} parent=5 // pred_region
        %s736 = ssub.s32 %s14, 2
        // Predicated region
        $region159: #{attention_forward.4} parent=157 // pred_check
          %p737 = pneg %p145
        $region160: #{attention_forward.4} parent=157 // pred_check_branch
          %739 = sbr.rel (%p737) target = $region162
        $region161: #{attention_forward.4} parent=157 // pred_region
          %s740 = sand.u32 %s130, 1
          %s741 = scalar_lea.sflag [#allocation6], %s740
          %s742 = sand.u32 %s130, 1
          %s743 = smul.addr %s742, 32
          %s744 = scalar_lea.vmem [#allocation5], %s743
          %745 = dma.done %s741, 512
        $region162: #{attention_forward.4} parent=157 // pred_fallthru
          _
        // Predicated region
        $region163: #{attention_forward.4} parent=157 // pred_check
          %p746 = pneg %p173
        $region164: #{attention_forward.4} parent=157 // pred_check_branch
          %748 = sbr.rel (%p746) target = $region166
        $region165: #{attention_forward.4} parent=157 // pred_region
          %s749 = smul.u32 2, %s26
          %p750 = scmp.lt.s32.totalorder %s25, 1
          %s751 = scalar_select %p750, %s25, 1
          %p752 = scmp.lt.s32.totalorder %s749, 1
          %s753 = scalar_select %p752, %s749, 1
          %s754 = smul.addr %s751, 4
          %s755 = sadd.s32 %s753, %s754
          %s756 = smul.addr %s755, 4
          %s757 = scalar_lea.vmem %s4, %s756
        $region166: #{attention_forward.4} parent=157 // pred_fallthru
          _
      $region158: #{attention_forward.4} parent=5 // pred_fallthru
        _
    $region6: #{attention_forward.4} parent=1 // loop_footer
      %s18 = sadd.s32 1, %s14
    $region7: #{attention_forward.4} parent=1 // loop_footer_branch
      %13 = sbr.rel target = $region3
    $region8: #{attention_forward.4} parent=1 // loop_exit
      _
    %758 = vsyncpa [#allocation6], 1
    %s759 = scalar_lea.sflag [#allocation6], 1
    %760 = vsyncpa %s759, 1

// kernel: attention_forward.3
$region0: #{attention_forward.3}
  #allocation0 [shape = 'u32[]', space=smem, size = 0x4, offset = 0x4, fixed_abs, tag = 'smem constant byte address 0x4 - core index']
  #allocation1 [shape = 'u32[144,128]{1,0:T(1,128)}', space=vmem, size = 0x12000, scoped, tag = 'internal scratch']
  #allocation2 [shape = 'f32[32,256]{1,0:T(8,128)}', space=vmem, size = 0x8000, scoped, tag = 'scratch operand']
  %s0 = inlined_call_operand.vmem [shape: bf16[32,256], index: 0, kind: input, shape index: {}]
  %s1 = inlined_call_operand.vmem [shape: bf16[256,768], index: 1, kind: input, shape index: {}]
  %s2 = inlined_call_operand.vmem [shape: bf16[32,768], index: 2, kind: output, shape index: {}]
  %s3 = sld [smem:[#allocation0]]
  $region121: #{attention_forward.3} parent=0
    _
  %s5 = ssub.s32 1, %s3
  %s6 = scalar_select 0, %s5, %s3
  $region1: #{attention_forward.3} parent=0
    #allocation3 [shape = 'u8[262144]{0}', space=vmem, size = 0x40000, scoped, tag = 'input window, operand 1']
    #allocation4 [shape = 'u8[32768]{0}', space=vmem, size = 0x8000, scoped, tag = 'output window, operand 0']
    loop: start=0, step=1, limit=5
    $region2: #{attention_forward.3} parent=1 // loop_pre_header
      _
    $region3: #{attention_forward.3} parent=1 // loop_header
      %s8 = sphi 0, %s12
      %p9 = scmp.ge.s32.totalorder %s8, 5
      %s15 = sphi 0, %s34
      %s16 = sphi 0, %s30
      %s17 = sphi 0, %s26
      %s18 = sphi 0, %s15
      %s19 = sphi 0, %s16
      %s20 = sphi 0, %s17
      %s21 = sphi 0, %s18
      %s22 = sphi 0, %s19
      %s23 = sphi 0, %s20
      %s39 = sphi 0, %s41
      %s42 = sphi 0, %s39
      %s43 = sphi 0, %s42
      %s59 = sphi 0, %s43
      %s67 = sphi 0, %s69
      %s70 = sphi 0, %s67
      %s71 = sphi 0, %s70
      %s87 = sphi 0, %s71
      %s95 = sphi 0, %s97
      %s98 = sphi 0, %s95
      %s99 = sphi 0, %s98
      %s115 = sphi 0, %s99
    $region4: #{attention_forward.3} parent=1 // loop_header_branch
      %11 = sbr.rel (%p9) target = $region8
    $region5: #{attention_forward.3} parent=1 // loop_body
      %s13 = ssub.s32 %s8, 1
      %s14 = ssub.s32 %s8, 2
      %s24 = sadd.s32 1, %s17
      %p25 = scmp.ge.s32.totalorder %s24, 1
      %s26 = scalar_select %p25, 0, %s24
      %s27 = sadd.s32 1, %s16
      %s28 = scalar_select %p25, %s27, %s16
      %p29 = scmp.ge.s32.totalorder %s28, 3
      %s30 = scalar_select %p29, 0, %s28
      %s31 = sadd.s32 1, %s15
      %s32 = scalar_select %p29, %s31, %s15
      %p33 = scmp.ge.s32.totalorder %s32, 1
      %s34 = scalar_select %p33, 0, %s32
      %s35 = ssub.s32 %s15, %s34
      %s36 = ssub.s32 %s17, %s26
      %s37 = sor.u32 %s35, %s36
      %p38 = scmp.eq.s32.totalorder %s37, 0
      %s40 = sadd.s32 %s39, 1
      %s41 = scalar_select %p38, %s39, %s40
      %p44 = pneg %p38
      %p45 = scmp.eq.s32.totalorder %s8, 2
      %p46 = por %p44, %p45
      %p47 = scmp.ne.s32.totalorder %s39, %s42
      %p48 = scmp.eq.s32.totalorder %s8, 0
      %p49 = por %p47, %p48
      %p50 = scmp.ne.s32.totalorder %s39, %s42
      %p51 = scmp.eq.s32.totalorder %s13, 2
      %p52 = por %p50, %p51
      %p53 = scmp.ne.s32.totalorder %s42, %s43
      %p54 = scmp.eq.s32.totalorder %s13, 0
      %p55 = por %p53, %p54
      %p56 = scmp.ne.s32.totalorder %s42, %s43
      %p57 = scmp.eq.s32.totalorder %s14, 2
      %p58 = por %p56, %p57
      %p60 = scmp.ne.s32.totalorder %s43, %s59
      %p61 = scmp.eq.s32.totalorder %s14, 0
      %p62 = por %p60, %p61
      %s63 = ssub.s32 %s17, %s26
      %s64 = ssub.s32 %s16, %s30
      %s65 = sor.u32 %s63, %s64
      %p66 = scmp.eq.s32.totalorder %s65, 0
      %s68 = sadd.s32 %s67, 1
      %s69 = scalar_select %p66, %s67, %s68
      %p72 = pneg %p66
      %p73 = scmp.eq.s32.totalorder %s8, 2
      %p74 = por %p72, %p73
      %p75 = scmp.ne.s32.totalorder %s67, %s70
      %p76 = scmp.eq.s32.totalorder %s8, 0
      %p77 = por %p75, %p76
      %p78 = scmp.ne.s32.totalorder %s67, %s70
      %p79 = scmp.eq.s32.totalorder %s13, 2
      %p80 = por %p78, %p79
      %p81 = scmp.ne.s32.totalorder %s70, %s71
      %p82 = scmp.eq.s32.totalorder %s13, 0
      %p83 = por %p81, %p82
      %p84 = scmp.ne.s32.totalorder %s70, %s71
      %p85 = scmp.eq.s32.totalorder %s14, 2
      %p86 = por %p84, %p85
      %p88 = scmp.ne.s32.totalorder %s71, %s87
      %p89 = scmp.eq.s32.totalorder %s14, 0
      %p90 = por %p88, %p89
      %s91 = ssub.s32 %s15, %s34
      %s92 = ssub.s32 %s16, %s30
      %s93 = sor.u32 %s91, %s92
      %p94 = scmp.eq.s32.totalorder %s93, 0
      %s96 = sadd.s32 %s95, 1
      %s97 = scalar_select %p94, %s95, %s96
      %p100 = pneg %p94
      %p101 = scmp.eq.s32.totalorder %s8, 2
      %p102 = por %p100, %p101
      %p103 = scmp.ne.s32.totalorder %s95, %s98
      %p104 = scmp.eq.s32.totalorder %s8, 0
      %p105 = por %p103, %p104
      %p106 = scmp.ne.s32.totalorder %s95, %s98
      %p107 = scmp.eq.s32.totalorder %s13, 2
      %p108 = por %p106, %p107
      %p109 = scmp.ne.s32.totalorder %s98, %s99
      %p110 = scmp.eq.s32.totalorder %s13, 0
      %p111 = por %p109, %p110
      %p112 = scmp.ne.s32.totalorder %s98, %s99
      %p113 = scmp.eq.s32.totalorder %s14, 2
      %p114 = por %p112, %p113
      %p116 = scmp.ne.s32.totalorder %s99, %s115
      %p117 = scmp.eq.s32.totalorder %s14, 0
      %p118 = por %p116, %p117
      %p119 = scmp.le.s32.totalorder 1, %s8
      %p120 = scmp.lt.s32.totalorder %s8, 4
      %p121 = pnand %p119, %p120
      %p122 = pneg %p121
      // Predicated region
      $region9: #{attention_forward.3} parent=5 // pred_check
        _
      $region10: #{attention_forward.3} parent=5 // pred_check_branch
        %124 = sbr.rel (%p121) target = $region12
      $region11: #{attention_forward.3} parent=5 // pred_region
        %s125 = ssub.s32 %s8, 1
        // Predicated region
        $region13: #{attention_forward.3} parent=11 // pred_check
          %p126 = pneg %p55
        $region14: #{attention_forward.3} parent=11 // pred_check_branch
          %128 = sbr.rel (%p126) target = $region16
        $region15: #{attention_forward.3} parent=11 // pred_region
          %s129 = smul.u32 4, %s18
          %s130 = smul.u32 2, %s20
          %p131 = scmp.lt.s32.totalorder %s129, 3
          %s132 = scalar_select %p131, %s129, 3
          %p133 = scmp.lt.s32.totalorder %s130, 1
          %s134 = scalar_select %p133, %s130, 1
          %s135 = smul.addr %s132, 2
          %s136 = sadd.s32 %s134, %s135
          %s137 = smul.addr %s136, 4
          %s138 = scalar_lea.vmem %s0, %s137
          %s139 = smul.u32 4, %s18
          %s140 = smul.u32 2, %s20
        $region16: #{attention_forward.3} parent=11 // pred_fallthru
          _
      $region12: #{attention_forward.3} parent=5 // pred_fallthru
        _
      %p141 = scmp.lt.s32.totalorder %s8, 3
      // Predicated region
      $region17: #{attention_forward.3} parent=5 // pred_check
        %p142 = pneg %p141
      $region18: #{attention_forward.3} parent=5 // pred_check_branch
        %144 = sbr.rel (%p142) target = $region20
      $region19: #{attention_forward.3} parent=5 // pred_region
        // Predicated region
        $region21: #{attention_forward.3} parent=19 // pred_check
          %p145 = pneg %p77
        $region22: #{attention_forward.3} parent=19 // pred_check_branch
          %147 = sbr.rel (%p145) target = $region24
        $region23: #{attention_forward.3} parent=19 // pred_region
          %s148 = sand.u32 %s67, 1
          %s149 = sand.u32 %s67, 1
          %s150 = smul.addr %s149, 256
          %s151 = scalar_lea.vmem [#allocation3], %s150
          %s152 = smul.u32 32, %s17
          %s153 = smul.u32 2, %s16
          %s154 = smul.addr %s152, 6
          %s155 = sadd.s32 %s153, %s154
          %s156 = smul.addr %s155, 4
          %s157 = scalar_lea.vmem %s1, %s156
          // Predicated region
          $region25: #{attention_forward.3} parent=23 // pred_check
            _
          $region26: #{attention_forward.3} parent=23 // pred_check_branch
            %159 = sbr.rel (0) target = $region28
          $region27: #{attention_forward.3} parent=23 // pred_region
            // Predicated region
            $region29: #{attention_forward.3} parent=27 // pred_check
              _
            $region30: #{attention_forward.3} parent=27 // pred_check_branch
              %161 = sbr.rel (0) target = $region32
            $region31: #{attention_forward.3} parent=27 // pred_region
              // Predicated region
              $region44: #{attention_forward.3} parent=31 // pred_check
                _
              $region45: #{attention_forward.3} parent=31 // pred_check_branch
                %239 = sbr.rel (0) target = $region47
              $region46: #{attention_forward.3} parent=31 // pred_region
                loop: start=0, step=1, limit=1
                $region48: #{attention_forward.3} parent=46 // loop_pre_header
                  _
                $region49: #{attention_forward.3} parent=46 // loop_header
                  %s241 = sphi 0, %s245
                  %p242 = scmp.ge.s32.totalorder %s241, 1
                  %s246 = sphi %s157, %s157
                  %s247 = sphi %s151, %s151
                $region50: #{attention_forward.3} parent=46 // loop_header_branch
                  %244 = sbr.rel (%p242) target = $region54
                $region51: #{attention_forward.3} parent=46 // loop_body
                  %v248 = vld [vmem:[%s246] sm:$0xff]
                  %249 = vst [vmem:[%s247] sm:$0xff] %v248
                  %v250 = vld [vmem:[%s246 + $0x18] sm:$0xff]
                  %251 = vst [vmem:[%s247 + $0x8] sm:$0xff] %v250
                  %v252 = vld [vmem:[%s246 + $0x30] sm:$0xff]
                  %253 = vst [vmem:[%s247 + $0x10] sm:$0xff] %v252
                  %v254 = vld [vmem:[%s246 + $0x48] sm:$0xff]
                  %255 = vst [vmem:[%s247 + $0x18] sm:$0xff] %v254
                  %v256 = vld [vmem:[%s246 + $0x60] sm:$0xff]
                  %257 = vst [vmem:[%s247 + $0x20] sm:$0xff] %v256
                  %v258 = vld [vmem:[%s246 + $0x78] sm:$0xff]
                  %259 = vst [vmem:[%s247 + $0x28] sm:$0xff] %v258
                  %v260 = vld [vmem:[%s246 + $0x90] sm:$0xff]
                  %261 = vst [vmem:[%s247 + $0x30] sm:$0xff] %v260
                  %v262 = vld [vmem:[%s246 + $0xa8] sm:$0xff]
                  %263 = vst [vmem:[%s247 + $0x38] sm:$0xff] %v262
                  %v264 = vld [vmem:[%s246 + $0xc0] sm:$0xff]
                  %265 = vst [vmem:[%s247 + $0x40] sm:$0xff] %v264
                  %v266 = vld [vmem:[%s246 + $0xd8] sm:$0xff]
                  %267 = vst [vmem:[%s247 + $0x48] sm:$0xff] %v266
                  %v268 = vld [vmem:[%s246 + $0xf0] sm:$0xff]
                  %269 = vst [vmem:[%s247 + $0x50] sm:$0xff] %v268
                  %v270 = vld [vmem:[%s246 + $0x108] sm:$0xff]
                  %271 = vst [vmem:[%s247 + $0x58] sm:$0xff] %v270
                  %v272 = vld [vmem:[%s246 + $0x120] sm:$0xff]
                  %273 = vst [vmem:[%s247 + $0x60] sm:$0xff] %v272
                  %v274 = vld [vmem:[%s246 + $0x138] sm:$0xff]
                  %275 = vst [vmem:[%s247 + $0x68] sm:$0xff] %v274
                  %v276 = vld [vmem:[%s246 + $0x150] sm:$0xff]
                  %277 = vst [vmem:[%s247 + $0x70] sm:$0xff] %v276
                  %v278 = vld [vmem:[%s246 + $0x168] sm:$0xff]
                  %279 = vst [vmem:[%s247 + $0x78] sm:$0xff] %v278
                  %v280 = vld [vmem:[%s246 + $0x180] sm:$0xff]
                  %281 = vst [vmem:[%s247 + $0x80] sm:$0xff] %v280
                  %v282 = vld [vmem:[%s246 + $0x198] sm:$0xff]
                  %283 = vst [vmem:[%s247 + $0x88] sm:$0xff] %v282
                  %v284 = vld [vmem:[%s246 + $0x1b0] sm:$0xff]
                  %285 = vst [vmem:[%s247 + $0x90] sm:$0xff] %v284
                  %v286 = vld [vmem:[%s246 + $0x1c8] sm:$0xff]
                  %287 = vst [vmem:[%s247 + $0x98] sm:$0xff] %v286
                  %v288 = vld [vmem:[%s246 + $0x1e0] sm:$0xff]
                  %289 = vst [vmem:[%s247 + $0xa0] sm:$0xff] %v288
                  %v290 = vld [vmem:[%s246 + $0x1f8] sm:$0xff]
                  %291 = vst [vmem:[%s247 + $0xa8] sm:$0xff] %v290
                  %v292 = vld [vmem:[%s246 + $0x210] sm:$0xff]
                  %293 = vst [vmem:[%s247 + $0xb0] sm:$0xff] %v292
                  %v294 = vld [vmem:[%s246 + $0x228] sm:$0xff]
                  %295 = vst [vmem:[%s247 + $0xb8] sm:$0xff] %v294
                  %v296 = vld [vmem:[%s246 + $0x240] sm:$0xff]
                  %297 = vst [vmem:[%s247 + $0xc0] sm:$0xff] %v296
                  %v298 = vld [vmem:[%s246 + $0x258] sm:$0xff]
                  %299 = vst [vmem:[%s247 + $0xc8] sm:$0xff] %v298
                  %v300 = vld [vmem:[%s246 + $0x270] sm:$0xff]
                  %301 = vst [vmem:[%s247 + $0xd0] sm:$0xff] %v300
                  %v302 = vld [vmem:[%s246 + $0x288] sm:$0xff]
                  %303 = vst [vmem:[%s247 + $0xd8] sm:$0xff] %v302
                  %v304 = vld [vmem:[%s246 + $0x2a0] sm:$0xff]
                  %305 = vst [vmem:[%s247 + $0xe0] sm:$0xff] %v304
                  %v306 = vld [vmem:[%s246 + $0x2b8] sm:$0xff]
                  %307 = vst [vmem:[%s247 + $0xe8] sm:$0xff] %v306
                  %v308 = vld [vmem:[%s246 + $0x2d0] sm:$0xff]
                  %309 = vst [vmem:[%s247 + $0xf0] sm:$0xff] %v308
                  %v310 = vld [vmem:[%s246 + $0x2e8] sm:$0xff]
                  %311 = vst [vmem:[%s247 + $0xf8] sm:$0xff] %v310
                $region52: #{attention_forward.3} parent=46 // loop_footer
                  %s245 = sadd.s32 1, %s241
                $region53: #{attention_forward.3} parent=46 // loop_footer_branch
                  %240 = sbr.rel target = $region49
                $region54: #{attention_forward.3} parent=46 // loop_exit
                  _
              $region47: #{attention_forward.3} parent=31 // pred_fallthru
                _
              // Predicated region
              $region55: #{attention_forward.3} parent=31 // pred_check
                _
              $region56: #{attention_forward.3} parent=31 // pred_check_branch
                %313 = sbr.rel target = $region58
              $region57: #{attention_forward.3} parent=31 // pred_region
                _
              $region58: #{attention_forward.3} parent=31 // pred_fallthru
                _
            $region32: #{attention_forward.3} parent=27 // pred_fallthru
              _
            // Predicated region
            $region33: #{attention_forward.3} parent=27 // pred_check
              _
            $region34: #{attention_forward.3} parent=27 // pred_check_branch
              %163 = sbr.rel target = $region36
            $region35: #{attention_forward.3} parent=27 // pred_region
              %s165 = ssub.s32 256, 1
              loop: start=0, step=1, limit=1
              $region37: #{attention_forward.3} parent=35 // loop_pre_header
                _
              $region38: #{attention_forward.3} parent=35 // loop_header
                %s167 = sphi 0, %s171
                %p168 = scmp.ge.s32.totalorder %s167, 1
                %s172 = sphi %s157, %s157
                %s173 = sphi %s151, %s151
              $region39: #{attention_forward.3} parent=35 // loop_header_branch
                %170 = sbr.rel (%p168) target = $region43
              $region40: #{attention_forward.3} parent=35 // loop_body
                %v174 = vld [vmem:[%s172] sm:%s165]
                %175 = vst [vmem:[%s173] sm:%s165] %v174
                %v176 = vld [vmem:[%s172 + $0x18] sm:%s165]
                %177 = vst [vmem:[%s173 + $0x8] sm:%s165] %v176
                %v178 = vld [vmem:[%s172 + $0x30] sm:%s165]
                %179 = vst [vmem:[%s173 + $0x10] sm:%s165] %v178
                %v180 = vld [vmem:[%s172 + $0x48] sm:%s165]
                %181 = vst [vmem:[%s173 + $0x18] sm:%s165] %v180
                %v182 = vld [vmem:[%s172 + $0x60] sm:%s165]
                %183 = vst [vmem:[%s173 + $0x20] sm:%s165] %v182
                %v184 = vld [vmem:[%s172 + $0x78] sm:%s165]
                %185 = vst [vmem:[%s173 + $0x28] sm:%s165] %v184
                %v186 = vld [vmem:[%s172 + $0x90] sm:%s165]
                %187 = vst [vmem:[%s173 + $0x30] sm:%s165] %v186
                %v188 = vld [vmem:[%s172 + $0xa8] sm:%s165]
                %189 = vst [vmem:[%s173 + $0x38] sm:%s165] %v188
                %v190 = vld [vmem:[%s172 + $0xc0] sm:%s165]
                %191 = vst [vmem:[%s173 + $0x40] sm:%s165] %v190
                %v192 = vld [vmem:[%s172 + $0xd8] sm:%s165]
                %193 = vst [vmem:[%s173 + $0x48] sm:%s165] %v192
                %v194 = vld [vmem:[%s172 + $0xf0] sm:%s165]
                %195 = vst [vmem:[%s173 + $0x50] sm:%s165] %v194
                %v196 = vld [vmem:[%s172 + $0x108] sm:%s165]
                %197 = vst [vmem:[%s173 + $0x58] sm:%s165] %v196
                %v198 = vld [vmem:[%s172 + $0x120] sm:%s165]
                %199 = vst [vmem:[%s173 + $0x60] sm:%s165] %v198
                %v200 = vld [vmem:[%s172 + $0x138] sm:%s165]
                %201 = vst [vmem:[%s173 + $0x68] sm:%s165] %v200
                %v202 = vld [vmem:[%s172 + $0x150] sm:%s165]
                %203 = vst [vmem:[%s173 + $0x70] sm:%s165] %v202
                %v204 = vld [vmem:[%s172 + $0x168] sm:%s165]
                %205 = vst [vmem:[%s173 + $0x78] sm:%s165] %v204
                %v206 = vld [vmem:[%s172 + $0x180] sm:%s165]
                %207 = vst [vmem:[%s173 + $0x80] sm:%s165] %v206
                %v208 = vld [vmem:[%s172 + $0x198] sm:%s165]
                %209 = vst [vmem:[%s173 + $0x88] sm:%s165] %v208
                %v210 = vld [vmem:[%s172 + $0x1b0] sm:%s165]
                %211 = vst [vmem:[%s173 + $0x90] sm:%s165] %v210
                %v212 = vld [vmem:[%s172 + $0x1c8] sm:%s165]
                %213 = vst [vmem:[%s173 + $0x98] sm:%s165] %v212
                %v214 = vld [vmem:[%s172 + $0x1e0] sm:%s165]
                %215 = vst [vmem:[%s173 + $0xa0] sm:%s165] %v214
                %v216 = vld [vmem:[%s172 + $0x1f8] sm:%s165]
                %217 = vst [vmem:[%s173 + $0xa8] sm:%s165] %v216
                %v218 = vld [vmem:[%s172 + $0x210] sm:%s165]
                %219 = vst [vmem:[%s173 + $0xb0] sm:%s165] %v218
                %v220 = vld [vmem:[%s172 + $0x228] sm:%s165]
                %221 = vst [vmem:[%s173 + $0xb8] sm:%s165] %v220
                %v222 = vld [vmem:[%s172 + $0x240] sm:%s165]
                %223 = vst [vmem:[%s173 + $0xc0] sm:%s165] %v222
                %v224 = vld [vmem:[%s172 + $0x258] sm:%s165]
                %225 = vst [vmem:[%s173 + $0xc8] sm:%s165] %v224
                %v226 = vld [vmem:[%s172 + $0x270] sm:%s165]
                %227 = vst [vmem:[%s173 + $0xd0] sm:%s165] %v226
                %v228 = vld [vmem:[%s172 + $0x288] sm:%s165]
                %229 = vst [vmem:[%s173 + $0xd8] sm:%s165] %v228
                %v230 = vld [vmem:[%s172 + $0x2a0] sm:%s165]
                %231 = vst [vmem:[%s173 + $0xe0] sm:%s165] %v230
                %v232 = vld [vmem:[%s172 + $0x2b8] sm:%s165]
                %233 = vst [vmem:[%s173 + $0xe8] sm:%s165] %v232
                %v234 = vld [vmem:[%s172 + $0x2d0] sm:%s165]
                %235 = vst [vmem:[%s173 + $0xf0] sm:%s165] %v234
                %v236 = vld [vmem:[%s172 + $0x2e8] sm:%s165]
                %237 = vst [vmem:[%s173 + $0xf8] sm:%s165] %v236
              $region41: #{attention_forward.3} parent=35 // loop_footer
                %s171 = sadd.s32 1, %s167
              $region42: #{attention_forward.3} parent=35 // loop_footer_branch
                %166 = sbr.rel target = $region38
              $region43: #{attention_forward.3} parent=35 // loop_exit
                _
            $region36: #{attention_forward.3} parent=27 // pred_fallthru
              _
          $region28: #{attention_forward.3} parent=23 // pred_fallthru
            _
          %314 = vnop
        $region24: #{attention_forward.3} parent=19 // pred_fallthru
          _
      $region20: #{attention_forward.3} parent=5 // pred_fallthru
        _
      %p315 = scmp.le.s32.totalorder 1, %s8
      %p316 = scmp.lt.s32.totalorder %s8, 4
      %p317 = pnand %p315, %p316
      %p318 = pneg %p317
      // Predicated region
      $region59: #{attention_forward.3} parent=5 // pred_check
        _
      $region60: #{attention_forward.3} parent=5 // pred_check_branch
        %320 = sbr.rel (%p317) target = $region62
      $region61: #{attention_forward.3} parent=5 // pred_region
        %s321 = ssub.s32 %s8, 1
        %s322 = sand.u32 %s70, 1
        %s323 = sand.u32 %s70, 1
        %s324 = smul.addr %s323, 256
        %s325 = scalar_lea.vmem [#allocation3], %s324
        // Predicated region
        $region63: #{attention_forward.3} parent=61 // pred_check
          %p326 = pneg %p83
        $region64: #{attention_forward.3} parent=61 // pred_check_branch
          %328 = sbr.rel (%p326) target = $region66
        $region65: #{attention_forward.3} parent=61 // pred_region
          _
        $region66: #{attention_forward.3} parent=61 // pred_fallthru
          _
        %s329 = smul.u32 4, %s18
        %s330 = smul.u32 2, %s20
        %p331 = scmp.lt.s32.totalorder %s329, 3
        %s332 = scalar_select %p331, %s329, 3
        %p333 = scmp.lt.s32.totalorder %s330, 1
        %s334 = scalar_select %p333, %s330, 1
        %s335 = smul.addr %s332, 2
        %s336 = sadd.s32 %s334, %s335
        %s337 = smul.addr %s336, 4
        %s338 = scalar_lea.vmem %s0, %s337
        %p339 = pneg %p55
        %p340 = pneg %p52
        %s341 = sand.u32 %s70, 1
        %s342 = sand.u32 %s70, 1
        %s343 = smul.addr %s342, 256
        %s344 = scalar_lea.vmem [#allocation3], %s343
        %p345 = pneg %p83
        %p346 = pneg %p80
        %p347 = pneg %p111
        %p348 = pneg %p108
        %s349 = sand.u32 %s98, 1
        %s350 = sand.u32 %s98, 1
        %s351 = smul.addr %s350, 32
        %s352 = scalar_lea.vmem [#allocation4], %s351
        %s353 = smul.u32 4, %s18
        %s354 = smul.u32 2, %s20
        %p355 = scmp.lt.s32.totalorder %s353, 3
        %s356 = scalar_select %p355, %s353, 3
        %p357 = scmp.lt.s32.totalorder %s354, 1
        %s358 = scalar_select %p357, %s354, 1
        %s359 = smul.addr %s356, 2
        %s360 = sadd.s32 %s358, %s359
        %s361 = smul.addr %s360, 4
        %s362 = scalar_lea.vmem %s0, %s361
        %s363 = smul.u32 4, %s18
        %s364 = smul.u32 2, %s20
        %s365 = smul.u32 32, %s20
        %s366 = smul.u32 2, %s19
        %s367 = smul.u32 4, %s18
        %s368 = smul.u32 2, %s19
        %p369 = scmp.eq.s32.totalorder %s20, 0
        // Predicated region
        $region67: #{attention_forward.3} parent=61 // pred_check
          %p370 = pneg %p369
        $region68: #{attention_forward.3} parent=61 // pred_check_branch
          %372 = sbr.rel (%p370) target = $region70
        $region69: #{attention_forward.3} parent=61 // pred_region
          %373 = vst [vmem:[#allocation2] sm:$0xff] 0.0
          %374 = vst [vmem:[#allocation2 + $0x8] sm:$0xff] 0.0
          %375 = vst [vmem:[#allocation2 + $0x10] sm:$0xff] 0.0
          %376 = vst [vmem:[#allocation2 + $0x18] sm:$0xff] 0.0
          %377 = vst [vmem:[#allocation2 + $0x20] sm:$0xff] 0.0
          %378 = vst [vmem:[#allocation2 + $0x28] sm:$0xff] 0.0
          %379 = vst [vmem:[#allocation2 + $0x30] sm:$0xff] 0.0
          %380 = vst [vmem:[#allocation2 + $0x38] sm:$0xff] 0.0
        $region70: #{attention_forward.3} parent=61 // pred_fallthru
          _
        %v381 = vld [vmem:[#allocation2] sm:$0xff]
        %v382 = vld [vmem:[#allocation2 + $0x8] sm:$0xff]
        %v383 = vld [vmem:[#allocation2 + $0x10] sm:$0xff]
        %v384 = vld [vmem:[#allocation2 + $0x18] sm:$0xff]
        %v385 = vld [vmem:[#allocation2 + $0x20] sm:$0xff]
        %v386 = vld [vmem:[#allocation2 + $0x28] sm:$0xff]
        %v387 = vld [vmem:[#allocation2 + $0x30] sm:$0xff]
        %v388 = vld [vmem:[#allocation2 + $0x38] sm:$0xff]
        %v389 = vld [vmem:[%s362] sm:$0xff]
        %v390 = vld [vmem:[%s362 + $0x8] sm:$0xff]
        %v391 = vld [vmem:[%s362 + $0x10] sm:$0xff]
        %v392 = vld [vmem:[%s362 + $0x18] sm:$0xff]
        %v393 = vld [vmem:[%s325] sm:$0xff]
        %v394 = vld [vmem:[%s325 + $0x8] sm:$0xff]
        %v395 = vld [vmem:[%s325 + $0x10] sm:$0xff]
        %v396 = vld [vmem:[%s325 + $0x18] sm:$0xff]
        %v397 = vld [vmem:[%s325 + $0x20] sm:$0xff]
        %v398 = vld [vmem:[%s325 + $0x28] sm:$0xff]
        %v399 = vld [vmem:[%s325 + $0x30] sm:$0xff]
        %v400 = vld [vmem:[%s325 + $0x38] sm:$0xff]
        %v401 = vld [vmem:[%s325 + $0x40] sm:$0xff]
        %v402 = vld [vmem:[%s325 + $0x48] sm:$0xff]
        %v403 = vld [vmem:[%s325 + $0x50] sm:$0xff]
        %v404 = vld [vmem:[%s325 + $0x58] sm:$0xff]
        %v405 = vld [vmem:[%s325 + $0x60] sm:$0xff]
        %v406 = vld [vmem:[%s325 + $0x68] sm:$0xff]
        %v407 = vld [vmem:[%s325 + $0x70] sm:$0xff]
        %v408 = vld [vmem:[%s325 + $0x78] sm:$0xff]
        %v409 = vld [vmem:[%s325 + $0x80] sm:$0xff]
        %v410 = vld [vmem:[%s325 + $0x88] sm:$0xff]
        %v411 = vld [vmem:[%s325 + $0x90] sm:$0xff]
        %v412 = vld [vmem:[%s325 + $0x98] sm:$0xff]
        %v413 = vld [vmem:[%s325 + $0xa0] sm:$0xff]
        %v414 = vld [vmem:[%s325 + $0xa8] sm:$0xff]
        %v415 = vld [vmem:[%s325 + $0xb0] sm:$0xff]
        %v416 = vld [vmem:[%s325 + $0xb8] sm:$0xff]
        %v417 = vld [vmem:[%s325 + $0xc0] sm:$0xff]
        %v418 = vld [vmem:[%s325 + $0xc8] sm:$0xff]
        %v419 = vld [vmem:[%s325 + $0xd0] sm:$0xff]
        %v420 = vld [vmem:[%s325 + $0xd8] sm:$0xff]
        %v421 = vld [vmem:[%s325 + $0xe0] sm:$0xff]
        %v422 = vld [vmem:[%s325 + $0xe8] sm:$0xff]
        %v423 = vld [vmem:[%s325 + $0xf0] sm:$0xff]
        %v424 = vld [vmem:[%s325 + $0xf8] sm:$0xff]
        %v429 = vunpack.c.l.b16 %v389
        %v430 = vunpack.c.h.b16 %v389
        %v431 = vunpack.c.l.b16 %v390
        %v432 = vunpack.c.h.b16 %v390
        %v433 = vunpack.c.l.b16 %v391
        %v434 = vunpack.c.h.b16 %v391
        %v435 = vunpack.c.l.b16 %v392
        %v436 = vunpack.c.h.b16 %v392
        %v437 = vpack.c.b16 %v431, %v429
        %v438 = vpack.c.b16 %v432, %v430
        %v439 = vpack.c.b16 %v435, %v433
        %v440 = vpack.c.b16 %v436, %v434
        %v477 = vunpack.c.l.b16 %v393
        %v478 = vunpack.c.h.b16 %v393
        %v479 = vunpack.c.l.b16 %v394
        %v480 = vunpack.c.h.b16 %v394
        %v481 = vunpack.c.l.b16 %v395
        %v482 = vunpack.c.h.b16 %v395
        %v483 = vunpack.c.l.b16 %v396
        %v484 = vunpack.c.h.b16 %v396
        %v485 = vunpack.c.l.b16 %v397
        %v486 = vunpack.c.h.b16 %v397
        %v487 = vunpack.c.l.b16 %v398
        %v488 = vunpack.c.h.b16 %v398
        %v489 = vunpack.c.l.b16 %v399
        %v490 = vunpack.c.h.b16 %v399
        %v491 = vunpack.c.l.b16 %v400
        %v492 = vunpack.c.h.b16 %v400
        %v493 = vunpack.c.l.b16 %v401
        %v494 = vunpack.c.h.b16 %v401
        %v495 = vunpack.c.l.b16 %v402
        %v496 = vunpack.c.h.b16 %v402
        %v497 = vunpack.c.l.b16 %v403
        %v498 = vunpack.c.h.b16 %v403
        %v499 = vunpack.c.l.b16 %v404
        %v500 = vunpack.c.h.b16 %v404
        %v501 = vunpack.c.l.b16 %v405
        %v502 = vunpack.c.h.b16 %v405
        %v503 = vunpack.c.l.b16 %v406
        %v504 = vunpack.c.h.b16 %v406
        %v505 = vunpack.c.l.b16 %v407
        %v506 = vunpack.c.h.b16 %v407
        %v507 = vunpack.c.l.b16 %v408
        %v508 = vunpack.c.h.b16 %v408
        %v509 = vunpack.c.l.b16 %v409
        %v510 = vunpack.c.h.b16 %v409
        %v511 = vunpack.c.l.b16 %v410
        %v512 = vunpack.c.h.b16 %v410
        %v513 = vunpack.c.l.b16 %v411
        %v514 = vunpack.c.h.b16 %v411
        %v515 = vunpack.c.l.b16 %v412
        %v516 = vunpack.c.h.b16 %v412
        %v517 = vunpack.c.l.b16 %v413
        %v518 = vunpack.c.h.b16 %v413
        %v519 = vunpack.c.l.b16 %v414
        %v520 = vunpack.c.h.b16 %v414
        %v521 = vunpack.c.l.b16 %v415
        %v522 = vunpack.c.h.b16 %v415
        %v523 = vunpack.c.l.b16 %v416
        %v524 = vunpack.c.h.b16 %v416
        %v525 = vunpack.c.l.b16 %v417
        %v526 = vunpack.c.h.b16 %v417
        %v527 = vunpack.c.l.b16 %v418
        %v528 = vunpack.c.h.b16 %v418
        %v529 = vunpack.c.l.b16 %v419
        %v530 = vunpack.c.h.b16 %v419
        %v531 = vunpack.c.l.b16 %v420
        %v532 = vunpack.c.h.b16 %v420
        %v533 = vunpack.c.l.b16 %v421
        %v534 = vunpack.c.h.b16 %v421
        %v535 = vunpack.c.l.b16 %v422
        %v536 = vunpack.c.h.b16 %v422
        %v537 = vunpack.c.l.b16 %v423
        %v538 = vunpack.c.h.b16 %v423
        %v539 = vunpack.c.l.b16 %v424
        %v540 = vunpack.c.h.b16 %v424
        %v541 = vpack.c.b16 %v479, %v477
        %v542 = vpack.c.b16 %v480, %v478
        %v543 = vpack.c.b16 %v483, %v481
        %v544 = vpack.c.b16 %v484, %v482
        %v545 = vpack.c.b16 %v487, %v485
        %v546 = vpack.c.b16 %v488, %v486
        %v547 = vpack.c.b16 %v491, %v489
        %v548 = vpack.c.b16 %v492, %v490
        %v549 = vpack.c.b16 %v495, %v493
        %v550 = vpack.c.b16 %v496, %v494
        %v551 = vpack.c.b16 %v499, %v497
        %v552 = vpack.c.b16 %v500, %v498
        %v553 = vpack.c.b16 %v503, %v501
        %v554 = vpack.c.b16 %v504, %v502
        %v555 = vpack.c.b16 %v507, %v505
        %v556 = vpack.c.b16 %v508, %v506
        %v557 = vpack.c.b16 %v511, %v509
        %v558 = vpack.c.b16 %v512, %v510
        %v559 = vpack.c.b16 %v515, %v513
        %v560 = vpack.c.b16 %v516, %v514
        %v561 = vpack.c.b16 %v519, %v517
        %v562 = vpack.c.b16 %v520, %v518
        %v563 = vpack.c.b16 %v523, %v521
        %v564 = vpack.c.b16 %v524, %v522
        %v565 = vpack.c.b16 %v527, %v525
        %v566 = vpack.c.b16 %v528, %v526
        %v567 = vpack.c.b16 %v531, %v529
        %v568 = vpack.c.b16 %v532, %v530
        %v569 = vpack.c.b16 %v535, %v533
        %v570 = vpack.c.b16 %v536, %v534
        %v571 = vpack.c.b16 %v539, %v537
        %v572 = vpack.c.b16 %v540, %v538
        %605 = vmatprep.subr.bf16.mxu0 %v556
        %606 = vmatpush1.bf16.msra.mxu0 %v555
        %607 = vmatprep.subr.bf16.mxu0 %v554
        %608 = vmatpush1.bf16.msra.mxu0 %v553
        %609 = vmatprep.subr.bf16.mxu0 %v552
        %610 = vmatpush1.bf16.msra.mxu0 %v551
        %611 = vmatprep.subr.bf16.mxu0 %v550
        %612 = vmatpush1.bf16.msra.mxu0 %v549
        %613 = vmatprep.subr.bf16.mxu0 %v548
        %614 = vmatpush1.bf16.msra.mxu0 %v547
        %615 = vmatprep.subr.bf16.mxu0 %v546
        %616 = vmatpush1.bf16.msra.mxu0 %v545
        %617 = vmatprep.subr.bf16.mxu0 %v544
        %618 = vmatpush1.bf16.msra.mxu0 %v543
        %619 = vmatprep.subr.bf16.mxu0 %v542
        %620 = vmatpush1.bf16.msra.mxu0 %v541
        %621 = vmatprep.subr.bf16.mxu0 %v572
        %622 = vmatpush2.bf16.msra.mxu0 %v571
        %623 = vmatprep.subr.bf16.mxu0 %v570
        %624 = vmatpush2.bf16.msra.mxu0 %v569
        %625 = vmatprep.subr.bf16.mxu0 %v568
        %626 = vmatpush2.bf16.msra.mxu0 %v567
        %627 = vmatprep.subr.bf16.mxu0 %v566
        %628 = vmatpush2.bf16.msra.mxu0 %v565
        %629 = vmatprep.subr.bf16.mxu0 %v564
        %630 = vmatpush2.bf16.msra.mxu0 %v563
        %631 = vmatprep.subr.bf16.mxu0 %v562
        %632 = vmatpush2.bf16.msra.mxu0 %v561
        %633 = vmatprep.subr.bf16.mxu0 %v560
        %634 = vmatpush2.bf16.msra.mxu0 %v559
        %635 = vmatprep.subr.bf16.mxu0 %v558
        %636 = vmatpush2.bf16.msra.mxu0 %v557
        %637 = vmatprep.mubr.bf16.mxu0 %v438
        %638 = vmatmul.mubr.bf16.gmra.mxu0 %v437
        %v639 = vpop.f32.mrf.mxu0
        %v640 = vadd.f32 0.0, %v639
        %v641 = vpop.f32.mrf.mxu0
        %v642 = vadd.f32 0.0, %v641
        %v643 = vpop.f32.mrf.mxu0
        %v644 = vadd.f32 0.0, %v643
        %v645 = vpop.f32.mrf.mxu0
        %v646 = vadd.f32 0.0, %v645
        %647 = vmatprep.mubr.bf16.mxu0 %v440
        %648 = vmatmul.mubr.bf16.gmra.mxu0 %v439
        %v649 = vpop.f32.mrf.mxu0
        %v650 = vadd.f32 0.0, %v649
        %v651 = vpop.f32.mrf.mxu0
        %v652 = vadd.f32 0.0, %v651
        %v653 = vpop.f32.mrf.mxu0
        %v654 = vadd.f32 0.0, %v653
        %v655 = vpop.f32.mrf.mxu0
        %v656 = vadd.f32 0.0, %v655
        %657 = vdwg.mxu0
        %v658 = vadd.f32 %v381, %v640
        %v659 = vadd.f32 %v382, %v642
        %v660 = vadd.f32 %v383, %v644
        %v661 = vadd.f32 %v384, %v646
        %v662 = vadd.f32 %v385, %v650
        %v663 = vadd.f32 %v386, %v652
        %v664 = vadd.f32 %v387, %v654
        %v665 = vadd.f32 %v388, %v656
        %666 = vst [vmem:[#allocation2] sm:$0xff] %v658
        %667 = vst [vmem:[#allocation2 + $0x8] sm:$0xff] %v659
        %668 = vst [vmem:[#allocation2 + $0x10] sm:$0xff] %v660
        %669 = vst [vmem:[#allocation2 + $0x18] sm:$0xff] %v661
        %670 = vst [vmem:[#allocation2 + $0x20] sm:$0xff] %v662
        %671 = vst [vmem:[#allocation2 + $0x28] sm:$0xff] %v663
        %672 = vst [vmem:[#allocation2 + $0x30] sm:$0xff] %v664
        %673 = vst [vmem:[#allocation2 + $0x38] sm:$0xff] %v665
        // Predicated region
        $region71: #{attention_forward.3} parent=61 // pred_check
          %p674 = pneg %p369
        $region72: #{attention_forward.3} parent=61 // pred_check_branch
          %676 = sbr.rel (%p674) target = $region74
        $region73: #{attention_forward.3} parent=61 // pred_region
          %v677 = vld [vmem:[#allocation2] sm:$0xff]
          %v678 = vld [vmem:[#allocation2 + $0x8] sm:$0xff]
          %v679 = vld [vmem:[#allocation2 + $0x10] sm:$0xff]
          %v680 = vld [vmem:[#allocation2 + $0x18] sm:$0xff]
          %v681 = vld [vmem:[#allocation2 + $0x20] sm:$0xff]
          %v682 = vld [vmem:[#allocation2 + $0x28] sm:$0xff]
          %v683 = vld [vmem:[#allocation2 + $0x30] sm:$0xff]
          %v684 = vld [vmem:[#allocation2 + $0x38] sm:$0xff]
          %v685 = vpack.c.bf16 %v679, %v677
          %v686 = vpack.c.bf16 %v680, %v678
          %v687 = vpack.c.bf16 %v683, %v681
          %v688 = vpack.c.bf16 %v684, %v682
          %v693 = vunpack.c.l.b16 %v685
          %v694 = vunpack.c.l.b16 %v686
          %v695 = vunpack.c.h.b16 %v685
          %v696 = vunpack.c.h.b16 %v686
          %v697 = vunpack.c.l.b16 %v687
          %v698 = vunpack.c.l.b16 %v688
          %v699 = vunpack.c.h.b16 %v687
          %v700 = vunpack.c.h.b16 %v688
          %v701 = vpack.c.b16 %v694, %v693
          %v702 = vpack.c.b16 %v696, %v695
          %v703 = vpack.c.b16 %v698, %v697
          %v704 = vpack.c.b16 %v700, %v699
          %709 = vst [vmem:[%s352] sm:$0xff] %v701
          %710 = vst [vmem:[%s352 + $0x8] sm:$0xff] %v702
          %711 = vst [vmem:[%s352 + $0x10] sm:$0xff] %v703
          %712 = vst [vmem:[%s352 + $0x18] sm:$0xff] %v704
        $region74: #{attention_forward.3} parent=61 // pred_fallthru
          _
        %s713 = sand.u32 %s98, 1
        %s714 = sand.u32 %s98, 1
        %s715 = smul.addr %s714, 32
        %s716 = scalar_lea.vmem [#allocation4], %s715
        // Predicated region
        $region75: #{attention_forward.3} parent=61 // pred_check
          %p717 = pneg %p108
        $region76: #{attention_forward.3} parent=61 // pred_check_branch
          %719 = sbr.rel (%p717) target = $region78
        $region77: #{attention_forward.3} parent=61 // pred_region
          %s720 = smul.u32 4, %s18
          %s721 = smul.u32 2, %s19
          %s722 = smul.addr %s720, 6
          %s723 = sadd.s32 %s721, %s722
          %s724 = smul.addr %s723, 4
          %s725 = scalar_lea.vmem %s2, %s724
          // Predicated region
          $region79: #{attention_forward.3} parent=77 // pred_check
            _
          $region80: #{attention_forward.3} parent=77 // pred_check_branch
            %727 = sbr.rel (0) target = $region82
          $region81: #{attention_forward.3} parent=77 // pred_region
            // Predicated region
            $region83: #{attention_forward.3} parent=81 // pred_check
              _
            $region84: #{attention_forward.3} parent=81 // pred_check_branch
              %729 = sbr.rel (0) target = $region86
            $region85: #{attention_forward.3} parent=81 // pred_region
              // Predicated region
              $region98: #{attention_forward.3} parent=85 // pred_check
                _
              $region99: #{attention_forward.3} parent=85 // pred_check_branch
                %751 = sbr.rel (0) target = $region101
              $region100: #{attention_forward.3} parent=85 // pred_region
                loop: start=0, step=1, limit=1
                $region102: #{attention_forward.3} parent=100 // loop_pre_header
                  _
                $region103: #{attention_forward.3} parent=100 // loop_header
                  %s753 = sphi 0, %s757
                  %p754 = scmp.ge.s32.totalorder %s753, 1
                  %s758 = sphi %s716, %s716
                  %s759 = sphi %s725, %s725
                $region104: #{attention_forward.3} parent=100 // loop_header_branch
                  %756 = sbr.rel (%p754) target = $region108
                $region105: #{attention_forward.3} parent=100 // loop_body
                  %v760 = vld [vmem:[%s758] sm:$0xff]
                  %761 = vst [vmem:[%s759] sm:$0xff] %v760
                  %v762 = vld [vmem:[%s758 + $0x8] sm:$0xff]
                  %763 = vst [vmem:[%s759 + $0x18] sm:$0xff] %v762
                  %v764 = vld [vmem:[%s758 + $0x10] sm:$0xff]
                  %765 = vst [vmem:[%s759 + $0x30] sm:$0xff] %v764
                  %v766 = vld [vmem:[%s758 + $0x18] sm:$0xff]
                  %767 = vst [vmem:[%s759 + $0x48] sm:$0xff] %v766
                $region106: #{attention_forward.3} parent=100 // loop_footer
                  %s757 = sadd.s32 1, %s753
                $region107: #{attention_forward.3} parent=100 // loop_footer_branch
                  %752 = sbr.rel target = $region103
                $region108: #{attention_forward.3} parent=100 // loop_exit
                  _
              $region101: #{attention_forward.3} parent=85 // pred_fallthru
                _
              // Predicated region
              $region109: #{attention_forward.3} parent=85 // pred_check
                _
              $region110: #{attention_forward.3} parent=85 // pred_check_branch
                %769 = sbr.rel target = $region112
              $region111: #{attention_forward.3} parent=85 // pred_region
                _
              $region112: #{attention_forward.3} parent=85 // pred_fallthru
                _
            $region86: #{attention_forward.3} parent=81 // pred_fallthru
              _
            // Predicated region
            $region87: #{attention_forward.3} parent=81 // pred_check
              _
            $region88: #{attention_forward.3} parent=81 // pred_check_branch
              %731 = sbr.rel target = $region90
            $region89: #{attention_forward.3} parent=81 // pred_region
              %s733 = ssub.s32 256, 1
              loop: start=0, step=1, limit=1
              $region91: #{attention_forward.3} parent=89 // loop_pre_header
                _
              $region92: #{attention_forward.3} parent=89 // loop_header
                %s735 = sphi 0, %s739
                %p736 = scmp.ge.s32.totalorder %s735, 1
                %s740 = sphi %s716, %s716
                %s741 = sphi %s725, %s725
              $region93: #{attention_forward.3} parent=89 // loop_header_branch
                %738 = sbr.rel (%p736) target = $region97
              $region94: #{attention_forward.3} parent=89 // loop_body
                %v742 = vld [vmem:[%s740] sm:%s733]
                %743 = vst [vmem:[%s741] sm:%s733] %v742
                %v744 = vld [vmem:[%s740 + $0x8] sm:%s733]
                %745 = vst [vmem:[%s741 + $0x18] sm:%s733] %v744
                %v746 = vld [vmem:[%s740 + $0x10] sm:%s733]
                %747 = vst [vmem:[%s741 + $0x30] sm:%s733] %v746
                %v748 = vld [vmem:[%s740 + $0x18] sm:%s733]
                %749 = vst [vmem:[%s741 + $0x48] sm:%s733] %v748
              $region95: #{attention_forward.3} parent=89 // loop_footer
                %s739 = sadd.s32 1, %s735
              $region96: #{attention_forward.3} parent=89 // loop_footer_branch
                %734 = sbr.rel target = $region92
              $region97: #{attention_forward.3} parent=89 // loop_exit
                _
            $region90: #{attention_forward.3} parent=81 // pred_fallthru
              _
          $region82: #{attention_forward.3} parent=77 // pred_fallthru
            _
          %770 = vnop
        $region78: #{attention_forward.3} parent=61 // pred_fallthru
          _
      $region62: #{attention_forward.3} parent=5 // pred_fallthru
        _
      %p771 = scmp.le.s32.totalorder 2, %s8
      // Predicated region
      $region113: #{attention_forward.3} parent=5 // pred_check
        %p772 = pneg %p771
      $region114: #{attention_forward.3} parent=5 // pred_check_branch
        %774 = sbr.rel (%p772) target = $region116
      $region115: #{attention_forward.3} parent=5 // pred_region
        %s775 = ssub.s32 %s8, 2
        // Predicated region
        $region117: #{attention_forward.3} parent=115 // pred_check
          %p776 = pneg %p114
        $region118: #{attention_forward.3} parent=115 // pred_check_branch
          %778 = sbr.rel (%p776) target = $region120
        $region119: #{attention_forward.3} parent=115 // pred_region
          %s779 = sand.u32 %s99, 1
          %s780 = sand.u32 %s99, 1
          %s781 = smul.addr %s780, 32
          %s782 = scalar_lea.vmem [#allocation4], %s781
        $region120: #{attention_forward.3} parent=115 // pred_fallthru
          _
      $region116: #{attention_forward.3} parent=5 // pred_fallthru
        _
    $region6: #{attention_forward.3} parent=1 // loop_footer
      %s12 = sadd.s32 1, %s8
    $region7: #{attention_forward.3} parent=1 // loop_footer_branch
      %7 = sbr.rel target = $region3
    $region8: #{attention_forward.3} parent=1 // loop_exit
      _

// kernel: attention_forward.5
$region0: #{attention_forward.5}
  #allocation0 [shape = 'u32[]', space=smem, size = 0x4, offset = 0x4, fixed_abs, tag = 'smem constant byte address 0x4 - core index']
  #allocation1 [shape = 'u32[144,128]{1,0:T(1,128)}', space=vmem, size = 0x12000, scoped, tag = 'internal scratch']
  #allocation2 [shape = 'f32[32,256]{1,0:T(8,128)}', space=vmem, size = 0x8000, scoped, tag = 'scratch operand']
  %s0 = inlined_call_operand.vmem [shape: bf16[32,256], index: 0, kind: input, shape index: {}]
  %s1 = inlined_call_operand.vmem [shape: bf16[256,256], index: 1, kind: input, shape index: {}]
  %s2 = inlined_call_operand.vmem [shape: f32[1,256], index: 2, kind: input, shape index: {}]
  %s3 = inlined_call_operand.hbm [shape: f32[32,256], index: 3, kind: output, shape index: {}]
  %s4 = sld [smem:[#allocation0]]
  $region30: #{attention_forward.5} parent=0
    _
  %s6 = ssub.s32 1, %s4
  %s7 = scalar_select 0, %s6, %s4
  $region1: #{attention_forward.5} parent=0
    #allocation3 [shape = 'u8[32768]{0}', space=vmem, size = 0x8000, scoped, tag = 'output window, operand 0, single buffered']
    #allocation4 [shape = 's32[1]{0}', space=sflag, size = 0x4, scoped, tag = 'scoped memory for attention_forward.5']
    %8 = vsyncpa [#allocation4], 0
    // Predicated region
    $region2: #{attention_forward.5} parent=1 // pred_check
      _
    $region3: #{attention_forward.5} parent=1 // pred_check_branch
      %10 = sbr.rel (0) target = $region5
    $region4: #{attention_forward.5} parent=1 // pred_region
      _
    $region5: #{attention_forward.5} parent=1 // pred_fallthru
      _
    // Predicated region
    $region6: #{attention_forward.5} parent=1 // pred_check
      _
    $region7: #{attention_forward.5} parent=1 // pred_check_branch
      %12 = sbr.rel (0) target = $region9
    $region8: #{attention_forward.5} parent=1 // pred_region
      _
    $region9: #{attention_forward.5} parent=1 // pred_fallthru
      _
    // Predicated region
    $region10: #{attention_forward.5} parent=1 // pred_check
      _
    $region11: #{attention_forward.5} parent=1 // pred_check_branch
      %14 = sbr.rel (0) target = $region13
    $region12: #{attention_forward.5} parent=1 // pred_region
      _
    $region13: #{attention_forward.5} parent=1 // pred_fallthru
      _
    %p15 = scmp.eq.s32.totalorder 0, 0
    // Predicated region
    $region14: #{attention_forward.5} parent=1 // pred_check
      %p16 = pneg %p15
    $region15: #{attention_forward.5} parent=1 // pred_check_branch
      %18 = sbr.rel (%p16) target = $region17
    $region16: #{attention_forward.5} parent=1 // pred_region
      %19 = vst [vmem:[#allocation2] sm:$0xff] 0.0
      %20 = vst [vmem:[#allocation2 + $0x8] sm:$0xff] 0.0
      %21 = vst [vmem:[#allocation2 + $0x10] sm:$0xff] 0.0
      %22 = vst [vmem:[#allocation2 + $0x18] sm:$0xff] 0.0
      %23 = vst [vmem:[#allocation2 + $0x20] sm:$0xff] 0.0
      %24 = vst [vmem:[#allocation2 + $0x28] sm:$0xff] 0.0
      %25 = vst [vmem:[#allocation2 + $0x30] sm:$0xff] 0.0
      %26 = vst [vmem:[#allocation2 + $0x38] sm:$0xff] 0.0
    $region17: #{attention_forward.5} parent=1 // pred_fallthru
      _
    %v27 = vld [vmem:[#allocation2] sm:$0xff]
    %v28 = vld [vmem:[#allocation2 + $0x8] sm:$0xff]
    %v29 = vld [vmem:[#allocation2 + $0x10] sm:$0xff]
    %v30 = vld [vmem:[#allocation2 + $0x18] sm:$0xff]
    %v31 = vld [vmem:[#allocation2 + $0x20] sm:$0xff]
    %v32 = vld [vmem:[#allocation2 + $0x28] sm:$0xff]
    %v33 = vld [vmem:[#allocation2 + $0x30] sm:$0xff]
    %v34 = vld [vmem:[#allocation2 + $0x38] sm:$0xff]
    %v35 = vld [vmem:[%s0] sm:$0xff]
    %v36 = vld [vmem:[%s0 + $0x8] sm:$0xff]
    %v37 = vld [vmem:[%s0 + $0x10] sm:$0xff]
    %v38 = vld [vmem:[%s0 + $0x18] sm:$0xff]
    %v39 = vld [vmem:[%s1] sm:$0xff]
    %v40 = vld [vmem:[%s1 + $0x8] sm:$0xff]
    %v41 = vld [vmem:[%s1 + $0x10] sm:$0xff]
    %v42 = vld [vmem:[%s1 + $0x18] sm:$0xff]
    %v43 = vld [vmem:[%s1 + $0x20] sm:$0xff]
    %v44 = vld [vmem:[%s1 + $0x28] sm:$0xff]
    %v45 = vld [vmem:[%s1 + $0x30] sm:$0xff]
    %v46 = vld [vmem:[%s1 + $0x38] sm:$0xff]
    %v47 = vld [vmem:[%s1 + $0x40] sm:$0xff]
    %v48 = vld [vmem:[%s1 + $0x48] sm:$0xff]
    %v49 = vld [vmem:[%s1 + $0x50] sm:$0xff]
    %v50 = vld [vmem:[%s1 + $0x58] sm:$0xff]
    %v51 = vld [vmem:[%s1 + $0x60] sm:$0xff]
    %v52 = vld [vmem:[%s1 + $0x68] sm:$0xff]
    %v53 = vld [vmem:[%s1 + $0x70] sm:$0xff]
    %v54 = vld [vmem:[%s1 + $0x78] sm:$0xff]
    %v55 = vld [vmem:[%s1 + $0x80] sm:$0xff]
    %v56 = vld [vmem:[%s1 + $0x88] sm:$0xff]
    %v57 = vld [vmem:[%s1 + $0x90] sm:$0xff]
    %v58 = vld [vmem:[%s1 + $0x98] sm:$0xff]
    %v59 = vld [vmem:[%s1 + $0xa0] sm:$0xff]
    %v60 = vld [vmem:[%s1 + $0xa8] sm:$0xff]
    %v61 = vld [vmem:[%s1 + $0xb0] sm:$0xff]
    %v62 = vld [vmem:[%s1 + $0xb8] sm:$0xff]
    %v63 = vld [vmem:[%s1 + $0xc0] sm:$0xff]
    %v64 = vld [vmem:[%s1 + $0xc8] sm:$0xff]
    %v65 = vld [vmem:[%s1 + $0xd0] sm:$0xff]
    %v66 = vld [vmem:[%s1 + $0xd8] sm:$0xff]
    %v67 = vld [vmem:[%s1 + $0xe0] sm:$0xff]
    %v68 = vld [vmem:[%s1 + $0xe8] sm:$0xff]
    %v69 = vld [vmem:[%s1 + $0xf0] sm:$0xff]
    %v70 = vld [vmem:[%s1 + $0xf8] sm:$0xff]
    %v75 = vunpack.c.l.b16 %v35
    %v76 = vunpack.c.h.b16 %v35
    %v77 = vunpack.c.l.b16 %v36
    %v78 = vunpack.c.h.b16 %v36
    %v79 = vunpack.c.l.b16 %v37
    %v80 = vunpack.c.h.b16 %v37
    %v81 = vunpack.c.l.b16 %v38
    %v82 = vunpack.c.h.b16 %v38
    %v83 = vpack.c.b16 %v77, %v75
    %v84 = vpack.c.b16 %v78, %v76
    %v85 = vpack.c.b16 %v81, %v79
    %v86 = vpack.c.b16 %v82, %v80
    %v123 = vunpack.c.l.b16 %v39
    %v124 = vunpack.c.h.b16 %v39
    %v125 = vunpack.c.l.b16 %v40
    %v126 = vunpack.c.h.b16 %v40
    %v127 = vunpack.c.l.b16 %v41
    %v128 = vunpack.c.h.b16 %v41
    %v129 = vunpack.c.l.b16 %v42
    %v130 = vunpack.c.h.b16 %v42
    %v131 = vunpack.c.l.b16 %v43
    %v132 = vunpack.c.h.b16 %v43
    %v133 = vunpack.c.l.b16 %v44
    %v134 = vunpack.c.h.b16 %v44
    %v135 = vunpack.c.l.b16 %v45
    %v136 = vunpack.c.h.b16 %v45
    %v137 = vunpack.c.l.b16 %v46
    %v138 = vunpack.c.h.b16 %v46
    %v139 = vunpack.c.l.b16 %v47
    %v140 = vunpack.c.h.b16 %v47
    %v141 = vunpack.c.l.b16 %v48
    %v142 = vunpack.c.h.b16 %v48
    %v143 = vunpack.c.l.b16 %v49
    %v144 = vunpack.c.h.b16 %v49
    %v145 = vunpack.c.l.b16 %v50
    %v146 = vunpack.c.h.b16 %v50
    %v147 = vunpack.c.l.b16 %v51
    %v148 = vunpack.c.h.b16 %v51
    %v149 = vunpack.c.l.b16 %v52
    %v150 = vunpack.c.h.b16 %v52
    %v151 = vunpack.c.l.b16 %v53
    %v152 = vunpack.c.h.b16 %v53
    %v153 = vunpack.c.l.b16 %v54
    %v154 = vunpack.c.h.b16 %v54
    %v155 = vunpack.c.l.b16 %v55
    %v156 = vunpack.c.h.b16 %v55
    %v157 = vunpack.c.l.b16 %v56
    %v158 = vunpack.c.h.b16 %v56
    %v159 = vunpack.c.l.b16 %v57
    %v160 = vunpack.c.h.b16 %v57
    %v161 = vunpack.c.l.b16 %v58
    %v162 = vunpack.c.h.b16 %v58
    %v163 = vunpack.c.l.b16 %v59
    %v164 = vunpack.c.h.b16 %v59
    %v165 = vunpack.c.l.b16 %v60
    %v166 = vunpack.c.h.b16 %v60
    %v167 = vunpack.c.l.b16 %v61
    %v168 = vunpack.c.h.b16 %v61
    %v169 = vunpack.c.l.b16 %v62
    %v170 = vunpack.c.h.b16 %v62
    %v171 = vunpack.c.l.b16 %v63
    %v172 = vunpack.c.h.b16 %v63
    %v173 = vunpack.c.l.b16 %v64
    %v174 = vunpack.c.h.b16 %v64
    %v175 = vunpack.c.l.b16 %v65
    %v176 = vunpack.c.h.b16 %v65
    %v177 = vunpack.c.l.b16 %v66
    %v178 = vunpack.c.h.b16 %v66
    %v179 = vunpack.c.l.b16 %v67
    %v180 = vunpack.c.h.b16 %v67
    %v181 = vunpack.c.l.b16 %v68
    %v182 = vunpack.c.h.b16 %v68
    %v183 = vunpack.c.l.b16 %v69
    %v184 = vunpack.c.h.b16 %v69
    %v185 = vunpack.c.l.b16 %v70
    %v186 = vunpack.c.h.b16 %v70
    %v187 = vpack.c.b16 %v125, %v123
    %v188 = vpack.c.b16 %v126, %v124
    %v189 = vpack.c.b16 %v129, %v127
    %v190 = vpack.c.b16 %v130, %v128
    %v191 = vpack.c.b16 %v133, %v131
    %v192 = vpack.c.b16 %v134, %v132
    %v193 = vpack.c.b16 %v137, %v135
    %v194 = vpack.c.b16 %v138, %v136
    %v195 = vpack.c.b16 %v141, %v139
    %v196 = vpack.c.b16 %v142, %v140
    %v197 = vpack.c.b16 %v145, %v143
    %v198 = vpack.c.b16 %v146, %v144
    %v199 = vpack.c.b16 %v149, %v147
    %v200 = vpack.c.b16 %v150, %v148
    %v201 = vpack.c.b16 %v153, %v151
    %v202 = vpack.c.b16 %v154, %v152
    %v203 = vpack.c.b16 %v157, %v155
    %v204 = vpack.c.b16 %v158, %v156
    %v205 = vpack.c.b16 %v161, %v159
    %v206 = vpack.c.b16 %v162, %v160
    %v207 = vpack.c.b16 %v165, %v163
    %v208 = vpack.c.b16 %v166, %v164
    %v209 = vpack.c.b16 %v169, %v167
    %v210 = vpack.c.b16 %v170, %v168
    %v211 = vpack.c.b16 %v173, %v171
    %v212 = vpack.c.b16 %v174, %v172
    %v213 = vpack.c.b16 %v177, %v175
    %v214 = vpack.c.b16 %v178, %v176
    %v215 = vpack.c.b16 %v181, %v179
    %v216 = vpack.c.b16 %v182, %v180
    %v217 = vpack.c.b16 %v185, %v183
    %v218 = vpack.c.b16 %v186, %v184
    %251 = vmatprep.subr.bf16.mxu0 %v202
    %252 = vmatpush1.bf16.msra.mxu0 %v201
    %253 = vmatprep.subr.bf16.mxu0 %v200
    %254 = vmatpush1.bf16.msra.mxu0 %v199
    %255 = vmatprep.subr.bf16.mxu0 %v198
    %256 = vmatpush1.bf16.msra.mxu0 %v197
    %257 = vmatprep.subr.bf16.mxu0 %v196
    %258 = vmatpush1.bf16.msra.mxu0 %v195
    %259 = vmatprep.subr.bf16.mxu0 %v194
    %260 = vmatpush1.bf16.msra.mxu0 %v193
    %261 = vmatprep.subr.bf16.mxu0 %v192
    %262 = vmatpush1.bf16.msra.mxu0 %v191
    %263 = vmatprep.subr.bf16.mxu0 %v190
    %264 = vmatpush1.bf16.msra.mxu0 %v189
    %265 = vmatprep.subr.bf16.mxu0 %v188
    %266 = vmatpush1.bf16.msra.mxu0 %v187
    %267 = vmatprep.subr.bf16.mxu0 %v218
    %268 = vmatpush2.bf16.msra.mxu0 %v217
    %269 = vmatprep.subr.bf16.mxu0 %v216
    %270 = vmatpush2.bf16.msra.mxu0 %v215
    %271 = vmatprep.subr.bf16.mxu0 %v214
    %272 = vmatpush2.bf16.msra.mxu0 %v213
    %273 = vmatprep.subr.bf16.mxu0 %v212
    %274 = vmatpush2.bf16.msra.mxu0 %v211
    %275 = vmatprep.subr.bf16.mxu0 %v210
    %276 = vmatpush2.bf16.msra.mxu0 %v209
    %277 = vmatprep.subr.bf16.mxu0 %v208
    %278 = vmatpush2.bf16.msra.mxu0 %v207
    %279 = vmatprep.subr.bf16.mxu0 %v206
    %280 = vmatpush2.bf16.msra.mxu0 %v205
    %281 = vmatprep.subr.bf16.mxu0 %v204
    %282 = vmatpush2.bf16.msra.mxu0 %v203
    %283 = vmatprep.mubr.bf16.mxu0 %v84
    %284 = vmatmul.mubr.bf16.gmra.mxu0 %v83
    %v285 = vpop.f32.mrf.mxu0
    %v286 = vadd.f32 0.0, %v285
    %v287 = vpop.f32.mrf.mxu0
    %v288 = vadd.f32 0.0, %v287
    %v289 = vpop.f32.mrf.mxu0
    %v290 = vadd.f32 0.0, %v289
    %v291 = vpop.f32.mrf.mxu0
    %v292 = vadd.f32 0.0, %v291
    %293 = vmatprep.mubr.bf16.mxu0 %v86
    %294 = vmatmul.mubr.bf16.gmra.mxu0 %v85
    %v295 = vpop.f32.mrf.mxu0
    %v296 = vadd.f32 0.0, %v295
    %v297 = vpop.f32.mrf.mxu0
    %v298 = vadd.f32 0.0, %v297
    %v299 = vpop.f32.mrf.mxu0
    %v300 = vadd.f32 0.0, %v299
    %v301 = vpop.f32.mrf.mxu0
    %v302 = vadd.f32 0.0, %v301
    %303 = vdwg.mxu0
    %v304 = vadd.f32 %v27, %v286
    %v305 = vadd.f32 %v28, %v288
    %v306 = vadd.f32 %v29, %v290
    %v307 = vadd.f32 %v30, %v292
    %v308 = vadd.f32 %v31, %v296
    %v309 = vadd.f32 %v32, %v298
    %v310 = vadd.f32 %v33, %v300
    %v311 = vadd.f32 %v34, %v302
    %312 = vst [vmem:[#allocation2] sm:$0xff] %v304
    %313 = vst [vmem:[#allocation2 + $0x8] sm:$0xff] %v305
    %314 = vst [vmem:[#allocation2 + $0x10] sm:$0xff] %v306
    %315 = vst [vmem:[#allocation2 + $0x18] sm:$0xff] %v307
    %316 = vst [vmem:[#allocation2 + $0x20] sm:$0xff] %v308
    %317 = vst [vmem:[#allocation2 + $0x28] sm:$0xff] %v309
    %318 = vst [vmem:[#allocation2 + $0x30] sm:$0xff] %v310
    %319 = vst [vmem:[#allocation2 + $0x38] sm:$0xff] %v311
    // Predicated region
    $region18: #{attention_forward.5} parent=1 // pred_check
      %p320 = pneg %p15
    $region19: #{attention_forward.5} parent=1 // pred_check_branch
      %322 = sbr.rel (%p320) target = $region21
    $region20: #{attention_forward.5} parent=1 // pred_region
      %v323 = vld [vmem:[#allocation2] sm:$0xff]
      %v324 = vld [vmem:[#allocation2 + $0x8] sm:$0xff]
      %v325 = vld [vmem:[#allocation2 + $0x10] sm:$0xff]
      %v326 = vld [vmem:[#allocation2 + $0x18] sm:$0xff]
      %v327 = vld [vmem:[#allocation2 + $0x20] sm:$0xff]
      %v328 = vld [vmem:[#allocation2 + $0x28] sm:$0xff]
      %v329 = vld [vmem:[#allocation2 + $0x30] sm:$0xff]
      %v330 = vld [vmem:[#allocation2 + $0x38] sm:$0xff]
      %v331 = vld [vmem:[%s2] sm:$0x3]
      %v333 = vlaneseq
      %v334 = vshrl.u32 %v333, 7
      %v335 = vsub.s32 0, %v334
      %v336 = vrot.slane %v331, %v335
      %v337 = vlaneseq
      %v338 = vshrl.u32 %v337, 7
      %v339 = vsub.s32 1, %v338
      %v340 = vrot.slane %v331, %v339
      %v343 = vadd.f32 %v323, %v336
      %v344 = vadd.f32 %v324, %v340
      %v345 = vadd.f32 %v325, %v336
      %v346 = vadd.f32 %v326, %v340
      %v347 = vadd.f32 %v327, %v336
      %v348 = vadd.f32 %v328, %v340
      %v349 = vadd.f32 %v329, %v336
      %v350 = vadd.f32 %v330, %v340
      %351 = vst [vmem:[#allocation3] sm:$0xff] %v343
      %352 = vst [vmem:[#allocation3 + $0x8] sm:$0xff] %v344
      %353 = vst [vmem:[#allocation3 + $0x10] sm:$0xff] %v345
      %354 = vst [vmem:[#allocation3 + $0x18] sm:$0xff] %v346
      %355 = vst [vmem:[#allocation3 + $0x20] sm:$0xff] %v347
      %356 = vst [vmem:[#allocation3 + $0x28] sm:$0xff] %v348
      %357 = vst [vmem:[#allocation3 + $0x30] sm:$0xff] %v349
      %358 = vst [vmem:[#allocation3 + $0x38] sm:$0xff] %v350
    $region21: #{attention_forward.5} parent=1 // pred_fallthru
      _
    // Predicated region
    $region22: #{attention_forward.5} parent=1 // pred_check
      _
    $region23: #{attention_forward.5} parent=1 // pred_check_branch
      %360 = sbr.rel (0) target = $region25
    $region24: #{attention_forward.5} parent=1 // pred_region
      %s362 = ssub.s32 1024, 1024
      %363 = vsyncadd [#allocation4], %s362
      %s364 = sshll.u32 [#allocation3], 4
      %s365 = int_to_ptr.vmem [resolvable:$true] %s364
      %370 = dma.vmem_to_hbm [thread:$0]  %s365, 1024, %s3, [#allocation4], 256, 256, 16
    $region25: #{attention_forward.5} parent=1 // pred_fallthru
      _
    // Predicated region
    $region26: #{attention_forward.5} parent=1 // pred_check
      _
    $region27: #{attention_forward.5} parent=1 // pred_check_branch
      %372 = sbr.rel (0) target = $region29
    $region28: #{attention_forward.5} parent=1 // pred_region
      %373 = dma.done [#allocation4], 1024
    $region29: #{attention_forward.5} parent=1 // pred_fallthru
      _
    %374 = vsyncpa [#allocation4], 1

</llo_original>
